<compile_context>
chip_gen: v5e
topology: v5e:2x2
jax: 0.10.0
libtpu: 0.0.40
codegen_flags: <defaults>
</compile_context>

<pallas_src>
import functools

import jax
import jax.numpy as jnp
from jax import lax
from jax.experimental import pallas as pl
from jax.experimental.pallas import tpu as pltpu


def _window_attn_kernel(x_ref, wqkv_ref, bqkv_ref, bias_ref, wp_ref, bp_ref,
                        o_ref, qkv_s, att_s, *, wb, n, c, num_heads, sub):
    """One grid step: `wb` windows of `n` tokens, `c` channels."""
    H, N, C = num_heads, n, c
    hd = C // H
    SUBN = sub * N                    # rows per packed attention tile
    BN = wb * N                       # rows in this block of windows
    n_tiles = wb // sub
    f32 = jnp.float32

    # ---- fused QKV projection: one (BN, C) @ (C, 3C) matmul ----------------
    x = x_ref[...].reshape(BN, C)                                      # bf16
    qkv = jnp.dot(x, wqkv_ref[...], preferred_element_type=f32)       # (BN, 3C)
    qkv_s[...] = (qkv + bqkv_ref[...]).astype(jnp.bfloat16)

    # ---- packed-window attention: SUB windows per tile ---------------------
    # bias_ref[h] = block-diag(pos[h]) with -1e9 off the window diagonal, so a
    # softmax over the packed SUBN columns equals the per-window softmax and
    # off-window probabilities are exactly 0 (p @ v stays per-window).
    def tile_body(t, carry):
        r0 = pl.multiple_of(t * SUBN, SUBN)
        rows = pl.ds(r0, SUBN)
        qkv_t = qkv_s[rows, :]                                         # (SUBN, 3C) bf16
        head_out = []
        for h in range(H):                                             # H small, static
            q_h = qkv_t[:, 0 * C + h * hd: 0 * C + (h + 1) * hd]      # (SUBN, hd)
            k_h = qkv_t[:, 1 * C + h * hd: 1 * C + (h + 1) * hd]
            v_h = qkv_t[:, 2 * C + h * hd: 2 * C + (h + 1) * hd]
            s = jnp.einsum('nd,md->nm', q_h, k_h,
                           preferred_element_type=f32)                 # (SUBN, SUBN)
            s = s + bias_ref[h]
            s = s - jnp.max(s, axis=-1, keepdims=True)
            p = jnp.exp(s)
            p = p * pl.reciprocal(jnp.sum(p, axis=-1, keepdims=True),
                                  approx=True)
            head_out.append(jnp.dot(p.astype(jnp.bfloat16), v_h,
                                    preferred_element_type=f32))       # (SUBN, hd)
        att_s[rows, :] = jnp.concatenate(head_out, axis=-1).astype(jnp.bfloat16)
        return carry

    lax.fori_loop(0, n_tiles, tile_body, 0)

    # ---- output projection: one (BN, C) @ (C, C) matmul --------------------
    y = jnp.dot(att_s[...], wp_ref[...], preferred_element_type=f32) + bp_ref[...]
    # TODO(synk): attn_drop / proj_drop are identity at inference (p=0.0); not implemented.
    o_ref[...] = y.reshape(wb, N, C).astype(o_ref.dtype)


def _pick_block_config(n_windows, sub):
    """Choose windows-per-grid-step and VMEM limit per TPU generation."""
    try:
        info = pltpu.get_tpu_info()
        vmem_cap = getattr(info, "vmem_capacity_bytes", 128 * 1024 * 1024)
    except Exception:                                   # CPU / unknown target
        vmem_cap = 128 * 1024 * 1024
    if vmem_cap <= 64 * 1024 * 1024:                    # v7x-class: 64 MiB / TC
        target_wb, vmem_limit = 256, 48 * 1024 * 1024
    else:                                               # v5e / v6e: 128 MiB
        target_wb, vmem_limit = 512, 64 * 1024 * 1024
    n_tiles_total = -(-n_windows // sub)
    max_tiles = max(1, target_wb // sub)
    # keep the "parallel" grid axis >= 2 steps when there is enough work so
    # both v7x TensorCores get windows; otherwise one (small) block.
    tiles_per_block = min(max_tiles, max(1, -(-n_tiles_total // 2)))
    return tiles_per_block * sub, vmem_limit


def window_attention(x, w_qkv, b_qkv, pos, w_proj, b_proj, *, num_heads,
                     sub=None, wb=None, vmem_limit_bytes=None):
    """x: (B_, N, C); w_qkv: (C, 3C); b_qkv: (3C,); pos: (H, N, N);
    w_proj: (C, C); b_proj: (C,).  Returns (B_, N, C).

    Matches the PyTorch WindowAttention forward (mask=None).  MXU operands are
    cast to bf16 (f32 accumulation) and the softmax denominator uses the
    approximate EUP reciprocal, so results are inference-accurate rather than
    bit-identical to an f32 reference.
    """
    B_, N, C = x.shape
    H = num_heads
    assert C % H == 0, "channels must be divisible by num_heads"
    hd = C // H
    scale = hd ** (-0.5)

    # windows packed per attention tile: aim for SUB*N ~ 128 (one vreg of lanes)
    if sub is None:
        sub = max(1, 128 // N)
    if wb is None or vmem_limit_bytes is None:
        auto_wb, auto_limit = _pick_block_config(B_, sub)
        wb = auto_wb if wb is None else wb
        vmem_limit_bytes = auto_limit if vmem_limit_bytes is None else vmem_limit_bytes
    wb = max(sub, (wb // sub) * sub)                     # multiple of sub
    SUBN = sub * N

    # ---- host-side (free) weight prep: fold qk scale, cast MXU operands ----
    wqkv = jnp.concatenate([w_qkv[:, :C] * scale, w_qkv[:, C:]], axis=1)
    wqkv = wqkv.astype(jnp.bfloat16)                                     # (C, 3C)
    bqkv = jnp.concatenate([b_qkv[:C] * scale, b_qkv[C:]])
    bqkv = bqkv.reshape(1, 3 * C).astype(jnp.float32)                    # (1, 3C)
    wp = w_proj.astype(jnp.bfloat16)                                     # (C, C)
    bp = b_proj.reshape(1, C).astype(jnp.float32)                        # (1, C)

    # position bias + block-diagonal window mask for the packed-window tiles
    win_id = jnp.repeat(jnp.arange(sub), N)                              # (SUBN,)
    same_win = win_id[:, None] == win_id[None, :]                        # (SUBN, SUBN)
    pos_tiled = jnp.tile(pos.astype(jnp.float32), (1, sub, sub))         # (H, SUBN, SUBN)
    attn_bias = jnp.where(same_win[None], pos_tiled, jnp.float32(-1e9))

    # ---- window batching: wb windows per grid step --------------------------
    x_bf = x.astype(jnp.bfloat16)
    num_blocks = -(-B_ // wb)
    B_pad = num_blocks * wb
    if B_pad != B_:
        x_bf = jnp.pad(x_bf, ((0, B_pad - B_), (0, 0), (0, 0)))

    kernel = functools.partial(_window_attn_kernel, wb=wb, n=N, c=C,
                               num_heads=H, sub=sub)

    # NOTE: with C=32 the output store is a masked 32/128-lane vst; a lane-dense
    # (wb, N*C) out_spec is a candidate on v5e (single store slot) -- measure.
    out = pl.pallas_call(
        kernel,
        out_shape=jax.ShapeDtypeStruct((B_pad, N, C), x.dtype),
        grid_spec=pltpu.PrefetchScalarGridSpec(
            num_scalar_prefetch=0,
            grid=(num_blocks,),
            in_specs=[
                pl.BlockSpec((wb, N, C), lambda b: (b, 0, 0)),        # x windows
                pl.BlockSpec((C, 3 * C), lambda b: (0, 0)),           # w_qkv (scale folded)
                pl.BlockSpec((1, 3 * C), lambda b: (0, 0)),           # b_qkv (scale folded)
                pl.BlockSpec((H, SUBN, SUBN), lambda b: (0, 0, 0)),   # pos bias + mask
                pl.BlockSpec((C, C), lambda b: (0, 0)),               # w_proj (unsplit)
                pl.BlockSpec((1, C), lambda b: (0, 0)),               # b_proj
            ],
            out_specs=pl.BlockSpec((wb, N, C), lambda b: (b, 0, 0)),
            scratch_shapes=[
                pltpu.VMEM((wb * N, 3 * C), jnp.bfloat16),            # fused qkv
                pltpu.VMEM((wb * N, C), jnp.bfloat16),                # pre-proj attn out
            ],
        ),
        compiler_params=pltpu.CompilerParams(
            dimension_semantics=("parallel",),     # window blocks are independent
            vmem_limit_bytes=vmem_limit_bytes,
        ),
    )(x_bf, wqkv, bqkv, attn_bias, wp, bp)

    return out[:B_]


def window_attention_ref(x, w_qkv, b_qkv, pos, w_proj, b_proj, *, num_heads):
    """Pure-JAX (f32) reference mirroring the PyTorch forward (mask=None path)."""
    B_, N, C = x.shape
    hd = C // num_heads
    scale = hd ** (-0.5)
    qkv = x @ w_qkv + b_qkv                                   # (B_, N, 3C)
    qkv = qkv.reshape(B_, N, 3, num_heads, hd).transpose(2, 0, 3, 1, 4)
    q, k, v = qkv[0], qkv[1], qkv[2]                          # (B_, H, N, hd)
    attn = (q * scale) @ jnp.swapaxes(k, -2, -1) + pos[None]  # (B_, H, N, N)
    attn = jax.nn.softmax(attn, axis=-1)
    out = (attn @ v).transpose(0, 2, 1, 3).reshape(B_, N, C)
    return out @ w_proj + b_proj


if __name__ == "__main__":
    # Small shapes: dim=32, window_size=8 (N=8), num_heads=4, B_=40 windows
    # (exercises the multi-block grid + padding path: wb auto-selects 32 -> grid=2).
    dim, window_size, num_heads = 32, 8, 4
    B_, N, C = 40, window_size, dim

    key = jax.random.PRNGKey(0)
    kx, kp, kw1, kb1, kw2, kb2 = jax.random.split(key, 6)

    x = jax.random.normal(kx, (B_, N, C), dtype=jnp.float32)

    # pos_embedding ~ trunc_normal(std=0.001) -> approximated by clipped normal
    pos = jnp.clip(jax.random.normal(kp, (num_heads, window_size, window_size)) * 0.001,
                   -0.002, 0.002).astype(jnp.float32)
    w_qkv = (jax.random.normal(kw1, (C, 3 * C)) * 0.05).astype(jnp.float32)
    b_qkv = (jax.random.normal(kb1, (3 * C,)) * 0.05).astype(jnp.float32)
    w_proj = (jax.random.normal(kw2, (C, C)) * 0.05).astype(jnp.float32)
    b_proj = (jax.random.normal(kb2, (C,)) * 0.05).astype(jnp.float32)

    out = window_attention(x, w_qkv, b_qkv, pos, w_proj, b_proj,
                           num_heads=num_heads)
    out = jax.block_until_ready(out)

    ref = window_attention_ref(x, w_qkv, b_qkv, pos, w_proj, b_proj,
                               num_heads=num_heads)
    assert out.shape == (B_, N, C)
    max_err = float(jnp.max(jnp.abs(out - ref)))
    # bf16 matmul operands + approx reciprocal -> loosened tolerance.
    assert jnp.allclose(out, ref, atol=2e-2, rtol=2e-2), max_err

    print("KERNEL_OK")
</pallas_src>

<mosaic_0001>
module attributes {stable_mosaic.version = 11 : i64} {
  func.func @_window_attn_kernel(%arg0: i32, %arg1: memref<32x8x32xbf16, #tpu.memory_space<vmem>>, %arg2: memref<32x96xbf16, #tpu.memory_space<vmem>>, %arg3: memref<1x96xf32, #tpu.memory_space<vmem>>, %arg4: memref<4x128x128xf32, #tpu.memory_space<vmem>>, %arg5: memref<32x32xbf16, #tpu.memory_space<vmem>>, %arg6: memref<1x32xf32, #tpu.memory_space<vmem>>, %arg7: memref<32x8x32xf32, #tpu.memory_space<vmem>>, %arg8: memref<256x96xbf16, #tpu.memory_space<vmem>>, %arg9: memref<256x32xbf16, #tpu.memory_space<vmem>>) attributes {dimension_semantics = [#tpu.dimension_semantics<parallel>], iteration_bounds = array<i64: 2>, scalar_prefetch = 0 : i64, scratch_operands = 2 : i64, tpu.core_type = #tpu.core_type<tc>, window_params = [{transform_indices = @transform_0, window_bounds = array<i64: 32, 8, 32>}, {pipeline_mode = #tpu.pipeline_mode<synchronous>, transform_indices = @transform_1, window_bounds = array<i64: 32, 96>}, {pipeline_mode = #tpu.pipeline_mode<synchronous>, transform_indices = @transform_2, window_bounds = array<i64: 1, 96>}, {pipeline_mode = #tpu.pipeline_mode<synchronous>, transform_indices = @transform_3, window_bounds = array<i64: 4, 128, 128>}, {pipeline_mode = #tpu.pipeline_mode<synchronous>, transform_indices = @transform_4, window_bounds = array<i64: 32, 32>}, {pipeline_mode = #tpu.pipeline_mode<synchronous>, transform_indices = @transform_5, window_bounds = array<i64: 1, 32>}, {transform_indices = @transform_6, window_bounds = array<i64: 32, 8, 32>}]} {
    %c0 = arith.constant 0 : index
    %c0_0 = arith.constant 0 : index
    %c0_1 = arith.constant 0 : index
    %0 = vector.load %arg1[%c0, %c0_0, %c0_1] : memref<32x8x32xbf16, #tpu.memory_space<vmem>>, vector<32x8x32xbf16>
    %1 = vector.shape_cast %0 : vector<32x8x32xbf16> to vector<256x32xbf16>
    %c0_2 = arith.constant 0 : index
    %c0_3 = arith.constant 0 : index
    %2 = vector.load %arg2[%c0_2, %c0_3] : memref<32x96xbf16, #tpu.memory_space<vmem>>, vector<32x96xbf16>
    %cst = arith.constant dense<0.000000e+00> : vector<256x96xf32>
    %3 = tpu.matmul %1, %2, %cst {dimension_numbers = #tpu.dot_dimension_numbers<[1], [0], [0], [1], [0, 0, 1, 1], [], []>} : vector<256x32xbf16>, vector<32x96xbf16>, vector<256x96xf32> -> vector<256x96xf32>
    %c0_4 = arith.constant 0 : index
    %c0_5 = arith.constant 0 : index
    %4 = vector.load %arg3[%c0_4, %c0_5] : memref<1x96xf32, #tpu.memory_space<vmem>>, vector<1x96xf32>
    %5 = vector.broadcast %4 : vector<1x96xf32> to vector<256x96xf32>
    %6 = arith.addf %3, %5 : vector<256x96xf32>
    %7 = arith.truncf %6 : vector<256x96xf32> to vector<256x96xbf16>
    %c0_6 = arith.constant 0 : index
    %c0_7 = arith.constant 0 : index
    %8 = vector.load %arg8[%c0_6, %c0_7] : memref<256x96xbf16, #tpu.memory_space<vmem>>, vector<256x96xbf16>
    tpu.vector_store %arg8[%c0_6, %c0_7], %7 {strides = array<i32>} : memref<256x96xbf16, #tpu.memory_space<vmem>>, vector<256x96xbf16>,
    %c0_i32 = arith.constant 0 : i32
    %c2_i32 = arith.constant 2 : i32
    %9 = arith.addi %c0_i32, %c2_i32 : i32
    %c1_i32 = arith.constant 1 : i32
    scf.for %arg10 = %c0_i32 to %9 step %c1_i32  : i32 {
      %c128_i32 = arith.constant 128 : i32
      %18 = arith.muli %arg10, %c128_i32 : i32
      %19 = tpu.assume_multiple %18, 128 : i32
      %20 = arith.index_cast %19 : i32 to index
      %c0_19 = arith.constant 0 : index
      %21 = vector.load %arg8[%20, %c0_19] : memref<256x96xbf16, #tpu.memory_space<vmem>>, vector<128x96xbf16>
      %22 = vector.extract_strided_slice %21 {offsets = [0, 0], sizes = [128, 8], strides = [1, 1]} : vector<128x96xbf16> to vector<128x8xbf16>
      %23 = vector.extract_strided_slice %21 {offsets = [0, 32], sizes = [128, 8], strides = [1, 1]} : vector<128x96xbf16> to vector<128x8xbf16>
      %24 = vector.extract_strided_slice %21 {offsets = [0, 64], sizes = [128, 8], strides = [1, 1]} : vector<128x96xbf16> to vector<128x8xbf16>
      "tpu.trace_start"() <{level = 10 : i32, message = "nd,md->nm"}> : () -> ()
      %cst_20 = arith.constant dense<0.000000e+00> : vector<128x128xf32>
      %25 = tpu.matmul %22, %23, %cst_20 {dimension_numbers = #tpu.dot_dimension_numbers<[1], [1], [0], [0], [0, 0, 1, 0], [], []>} : vector<128x8xbf16>, vector<128x8xbf16>, vector<128x128xf32> -> vector<128x128xf32>
      "tpu.trace_stop"() : () -> ()
      %c0_21 = arith.constant 0 : index
      %c0_22 = arith.constant 0 : index
      %c0_23 = arith.constant 0 : index
      %26 = vector.load %arg4[%c0_21, %c0_22, %c0_23] : memref<4x128x128xf32, #tpu.memory_space<vmem>>, vector<1x128x128xf32>
      %27 = vector.shape_cast %26 : vector<1x128x128xf32> to vector<128x128xf32>
      %28 = arith.addf %25, %27 : vector<128x128xf32>
      %cst_24 = arith.constant dense<0xFF800000> : vector<128xf32>
      %29 = vector.multi_reduction <maximumf>, %28, %cst_24 [1] : vector<128x128xf32> to vector<128xf32>
      %30 = vector.shape_cast %29 : vector<128xf32> to vector<128x1xf32>
      %31 = vector.broadcast %30 : vector<128x1xf32> to vector<128x128xf32>
      %32 = arith.subf %28, %31 : vector<128x128xf32>
      %33 = math.exp %32 : vector<128x128xf32>
      %cst_25 = arith.constant dense<0.000000e+00> : vector<128xf32>
      %34 = vector.multi_reduction <add>, %33, %cst_25 [1] : vector<128x128xf32> to vector<128xf32>
      %35 = vector.shape_cast %34 : vector<128xf32> to vector<128x1xf32>
      %36 = tpu.reciprocal %35 {approx = true} : vector<128x1xf32> -> vector<128x1xf32>
      %37 = vector.broadcast %36 : vector<128x1xf32> to vector<128x128xf32>
      %38 = arith.mulf %33, %37 : vector<128x128xf32>
      %39 = arith.truncf %38 : vector<128x128xf32> to vector<128x128xbf16>
      %cst_26 = arith.constant dense<0.000000e+00> : vector<128x8xf32>
      %40 = tpu.matmul %39, %24, %cst_26 {dimension_numbers = #tpu.dot_dimension_numbers<[1], [0], [0], [1], [0, 0, 1, 1], [], []>} : vector<128x128xbf16>, vector<128x8xbf16>, vector<128x8xf32> -> vector<128x8xf32>
      %41 = vector.extract_strided_slice %21 {offsets = [0, 8], sizes = [128, 8], strides = [1, 1]} : vector<128x96xbf16> to vector<128x8xbf16>
      %42 = vector.extract_strided_slice %21 {offsets = [0, 40], sizes = [128, 8], strides = [1, 1]} : vector<128x96xbf16> to vector<128x8xbf16>
      %43 = vector.extract_strided_slice %21 {offsets = [0, 72], sizes = [128, 8], strides = [1, 1]} : vector<128x96xbf16> to vector<128x8xbf16>
      "tpu.trace_start"() <{level = 10 : i32, message = "nd,md->nm"}> : () -> ()
      %cst_27 = arith.constant dense<0.000000e+00> : vector<128x128xf32>
      %44 = tpu.matmul %41, %42, %cst_27 {dimension_numbers = #tpu.dot_dimension_numbers<[1], [1], [0], [0], [0, 0, 1, 0], [], []>} : vector<128x8xbf16>, vector<128x8xbf16>, vector<128x128xf32> -> vector<128x128xf32>
      "tpu.trace_stop"() : () -> ()
      %c1 = arith.constant 1 : index
      %c0_28 = arith.constant 0 : index
      %c0_29 = arith.constant 0 : index
      %45 = vector.load %arg4[%c1, %c0_28, %c0_29] : memref<4x128x128xf32, #tpu.memory_space<vmem>>, vector<1x128x128xf32>
      %46 = vector.shape_cast %45 : vector<1x128x128xf32> to vector<128x128xf32>
      %47 = arith.addf %44, %46 : vector<128x128xf32>
      %cst_30 = arith.constant dense<0xFF800000> : vector<128xf32>
      %48 = vector.multi_reduction <maximumf>, %47, %cst_30 [1] : vector<128x128xf32> to vector<128xf32>
      %49 = vector.shape_cast %48 : vector<128xf32> to vector<128x1xf32>
      %50 = vector.broadcast %49 : vector<128x1xf32> to vector<128x128xf32>
      %51 = arith.subf %47, %50 : vector<128x128xf32>
      %52 = math.exp %51 : vector<128x128xf32>
      %cst_31 = arith.constant dense<0.000000e+00> : vector<128xf32>
      %53 = vector.multi_reduction <add>, %52, %cst_31 [1] : vector<128x128xf32> to vector<128xf32>
      %54 = vector.shape_cast %53 : vector<128xf32> to vector<128x1xf32>
      %55 = tpu.reciprocal %54 {approx = true} : vector<128x1xf32> -> vector<128x1xf32>
      %56 = vector.broadcast %55 : vector<128x1xf32> to vector<128x128xf32>
      %57 = arith.mulf %52, %56 : vector<128x128xf32>
      %58 = arith.truncf %57 : vector<128x128xf32> to vector<128x128xbf16>
      %cst_32 = arith.constant dense<0.000000e+00> : vector<128x8xf32>
      %59 = tpu.matmul %58, %43, %cst_32 {dimension_numbers = #tpu.dot_dimension_numbers<[1], [0], [0], [1], [0, 0, 1, 1], [], []>} : vector<128x128xbf16>, vector<128x8xbf16>, vector<128x8xf32> -> vector<128x8xf32>
      %60 = vector.extract_strided_slice %21 {offsets = [0, 16], sizes = [128, 8], strides = [1, 1]} : vector<128x96xbf16> to vector<128x8xbf16>
      %61 = vector.extract_strided_slice %21 {offsets = [0, 48], sizes = [128, 8], strides = [1, 1]} : vector<128x96xbf16> to vector<128x8xbf16>
      %62 = vector.extract_strided_slice %21 {offsets = [0, 80], sizes = [128, 8], strides = [1, 1]} : vector<128x96xbf16> to vector<128x8xbf16>
      "tpu.trace_start"() <{level = 10 : i32, message = "nd,md->nm"}> : () -> ()
      %cst_33 = arith.constant dense<0.000000e+00> : vector<128x128xf32>
      %63 = tpu.matmul %60, %61, %cst_33 {dimension_numbers = #tpu.dot_dimension_numbers<[1], [1], [0], [0], [0, 0, 1, 0], [], []>} : vector<128x8xbf16>, vector<128x8xbf16>, vector<128x128xf32> -> vector<128x128xf32>
      "tpu.trace_stop"() : () -> ()
      %c2 = arith.constant 2 : index
      %c0_34 = arith.constant 0 : index
      %c0_35 = arith.constant 0 : index
      %64 = vector.load %arg4[%c2, %c0_34, %c0_35] : memref<4x128x128xf32, #tpu.memory_space<vmem>>, vector<1x128x128xf32>
      %65 = vector.shape_cast %64 : vector<1x128x128xf32> to vector<128x128xf32>
      %66 = arith.addf %63, %65 : vector<128x128xf32>
      %cst_36 = arith.constant dense<0xFF800000> : vector<128xf32>
      %67 = vector.multi_reduction <maximumf>, %66, %cst_36 [1] : vector<128x128xf32> to vector<128xf32>
      %68 = vector.shape_cast %67 : vector<128xf32> to vector<128x1xf32>
      %69 = vector.broadcast %68 : vector<128x1xf32> to vector<128x128xf32>
      %70 = arith.subf %66, %69 : vector<128x128xf32>
      %71 = math.exp %70 : vector<128x128xf32>
      %cst_37 = arith.constant dense<0.000000e+00> : vector<128xf32>
      %72 = vector.multi_reduction <add>, %71, %cst_37 [1] : vector<128x128xf32> to vector<128xf32>
      %73 = vector.shape_cast %72 : vector<128xf32> to vector<128x1xf32>
      %74 = tpu.reciprocal %73 {approx = true} : vector<128x1xf32> -> vector<128x1xf32>
      %75 = vector.broadcast %74 : vector<128x1xf32> to vector<128x128xf32>
      %76 = arith.mulf %71, %75 : vector<128x128xf32>
      %77 = arith.truncf %76 : vector<128x128xf32> to vector<128x128xbf16>
      %cst_38 = arith.constant dense<0.000000e+00> : vector<128x8xf32>
      %78 = tpu.matmul %77, %62, %cst_38 {dimension_numbers = #tpu.dot_dimension_numbers<[1], [0], [0], [1], [0, 0, 1, 1], [], []>} : vector<128x128xbf16>, vector<128x8xbf16>, vector<128x8xf32> -> vector<128x8xf32>
      %79 = vector.extract_strided_slice %21 {offsets = [0, 24], sizes = [128, 8], strides = [1, 1]} : vector<128x96xbf16> to vector<128x8xbf16>
      %80 = vector.extract_strided_slice %21 {offsets = [0, 56], sizes = [128, 8], strides = [1, 1]} : vector<128x96xbf16> to vector<128x8xbf16>
      %81 = vector.extract_strided_slice %21 {offsets = [0, 88], sizes = [128, 8], strides = [1, 1]} : vector<128x96xbf16> to vector<128x8xbf16>
      "tpu.trace_start"() <{level = 10 : i32, message = "nd,md->nm"}> : () -> ()
      %cst_39 = arith.constant dense<0.000000e+00> : vector<128x128xf32>
      %82 = tpu.matmul %79, %80, %cst_39 {dimension_numbers = #tpu.dot_dimension_numbers<[1], [1], [0], [0], [0, 0, 1, 0], [], []>} : vector<128x8xbf16>, vector<128x8xbf16>, vector<128x128xf32> -> vector<128x128xf32>
      "tpu.trace_stop"() : () -> ()
      %c3 = arith.constant 3 : index
      %c0_40 = arith.constant 0 : index
      %c0_41 = arith.constant 0 : index
      %83 = vector.load %arg4[%c3, %c0_40, %c0_41] : memref<4x128x128xf32, #tpu.memory_space<vmem>>, vector<1x128x128xf32>
      %84 = vector.shape_cast %83 : vector<1x128x128xf32> to vector<128x128xf32>
      %85 = arith.addf %82, %84 : vector<128x128xf32>
      %cst_42 = arith.constant dense<0xFF800000> : vector<128xf32>
      %86 = vector.multi_reduction <maximumf>, %85, %cst_42 [1] : vector<128x128xf32> to vector<128xf32>
      %87 = vector.shape_cast %86 : vector<128xf32> to vector<128x1xf32>
      %88 = vector.broadcast %87 : vector<128x1xf32> to vector<128x128xf32>
      %89 = arith.subf %85, %88 : vector<128x128xf32>
      %90 = math.exp %89 : vector<128x128xf32>
      %cst_43 = arith.constant dense<0.000000e+00> : vector<128xf32>
      %91 = vector.multi_reduction <add>, %90, %cst_43 [1] : vector<128x128xf32> to vector<128xf32>
      %92 = vector.shape_cast %91 : vector<128xf32> to vector<128x1xf32>
      %93 = tpu.reciprocal %92 {approx = true} : vector<128x1xf32> -> vector<128x1xf32>
      %94 = vector.broadcast %93 : vector<128x1xf32> to vector<128x128xf32>
      %95 = arith.mulf %90, %94 : vector<128x128xf32>
      %96 = arith.truncf %95 : vector<128x128xf32> to vector<128x128xbf16>
      %cst_44 = arith.constant dense<0.000000e+00> : vector<128x8xf32>
      %97 = tpu.matmul %96, %81, %cst_44 {dimension_numbers = #tpu.dot_dimension_numbers<[1], [0], [0], [1], [0, 0, 1, 1], [], []>} : vector<128x128xbf16>, vector<128x8xbf16>, vector<128x8xf32> -> vector<128x8xf32>
      %98 = tpu.concatenate %40, %59, %78, %97 in 1 : vector<128x8xf32>, vector<128x8xf32>, vector<128x8xf32>, vector<128x8xf32> -> vector<128x32xf32>
      %99 = arith.truncf %98 : vector<128x32xf32> to vector<128x32xbf16>
      %100 = arith.index_cast %19 : i32 to index
      %c0_45 = arith.constant 0 : index
      %101 = vector.load %arg9[%100, %c0_45] : memref<256x32xbf16, #tpu.memory_space<vmem>>, vector<128x32xbf16>
      tpu.vector_store %arg9[%100, %c0_45], %99 {strides = array<i32>} : memref<256x32xbf16, #tpu.memory_space<vmem>>, vector<128x32xbf16>,
    }
    %c2_i32_8 = arith.constant 2 : i32
    %c0_9 = arith.constant 0 : index
    %c0_10 = arith.constant 0 : index
    %10 = vector.load %arg9[%c0_9, %c0_10] : memref<256x32xbf16, #tpu.memory_space<vmem>>, vector<256x32xbf16>
    %c0_11 = arith.constant 0 : index
    %c0_12 = arith.constant 0 : index
    %11 = vector.load %arg5[%c0_11, %c0_12] : memref<32x32xbf16, #tpu.memory_space<vmem>>, vector<32x32xbf16>
    %cst_13 = arith.constant dense<0.000000e+00> : vector<256x32xf32>
    %12 = tpu.matmul %10, %11, %cst_13 {dimension_numbers = #tpu.dot_dimension_numbers<[1], [0], [0], [1], [0, 0, 1, 1], [], []>} : vector<256x32xbf16>, vector<32x32xbf16>, vector<256x32xf32> -> vector<256x32xf32>
    %c0_14 = arith.constant 0 : index
    %c0_15 = arith.constant 0 : index
    %13 = vector.load %arg6[%c0_14, %c0_15] : memref<1x32xf32, #tpu.memory_space<vmem>>, vector<1x32xf32>
    %14 = vector.broadcast %13 : vector<1x32xf32> to vector<256x32xf32>
    %15 = arith.addf %12, %14 : vector<256x32xf32>
    %16 = vector.shape_cast %15 : vector<256x32xf32> to vector<32x8x32xf32>
    %c0_16 = arith.constant 0 : index
    %c0_17 = arith.constant 0 : index
    %c0_18 = arith.constant 0 : index
    %17 = vector.load %arg7[%c0_16, %c0_17, %c0_18] : memref<32x8x32xf32, #tpu.memory_space<vmem>>, vector<32x8x32xf32>
    tpu.vector_store %arg7[%c0_16, %c0_17, %c0_18], %16 {strides = array<i32>} : memref<32x8x32xf32, #tpu.memory_space<vmem>>, vector<32x8x32xf32>,
    return
  }
  func.func @transform_0(%arg0: i32) -> (i32, i32, i32) {
    %c0_i32 = arith.constant 0 : i32
    %c0_i32_0 = arith.constant 0 : i32
    %c0_i32_1 = arith.constant 0 : i32
    return %arg0, %c0_i32, %c0_i32_0 : i32, i32, i32
  }
  func.func @transform_1(%arg0: i32) -> (i32, i32) {
    %c0_i32 = arith.constant 0 : i32
    %c0_i32_0 = arith.constant 0 : i32
    %c0_i32_1 = arith.constant 0 : i32
    return %c0_i32, %c0_i32_0 : i32, i32
  }
  func.func @transform_2(%arg0: i32) -> (i32, i32) {
    %c0_i32 = arith.constant 0 : i32
    %c0_i32_0 = arith.constant 0 : i32
    %c0_i32_1 = arith.constant 0 : i32
    return %c0_i32, %c0_i32_0 : i32, i32
  }
  func.func @transform_3(%arg0: i32) -> (i32, i32, i32) {
    %c0_i32 = arith.constant 0 : i32
    %c0_i32_0 = arith.constant 0 : i32
    %c0_i32_1 = arith.constant 0 : i32
    %c0_i32_2 = arith.constant 0 : i32
    return %c0_i32, %c0_i32_0, %c0_i32_1 : i32, i32, i32
  }
  func.func @transform_4(%arg0: i32) -> (i32, i32) {
    %c0_i32 = arith.constant 0 : i32
    %c0_i32_0 = arith.constant 0 : i32
    %c0_i32_1 = arith.constant 0 : i32
    return %c0_i32, %c0_i32_0 : i32, i32
  }
  func.func @transform_5(%arg0: i32) -> (i32, i32) {
    %c0_i32 = arith.constant 0 : i32
    %c0_i32_0 = arith.constant 0 : i32
    %c0_i32_1 = arith.constant 0 : i32
    return %c0_i32, %c0_i32_0 : i32, i32
  }
  func.func @transform_6(%arg0: i32) -> (i32, i32, i32) {
    %c0_i32 = arith.constant 0 : i32
    %c0_i32_0 = arith.constant 0 : i32
    %c0_i32_1 = arith.constant 0 : i32
    return %arg0, %c0_i32, %c0_i32_0 : i32, i32, i32
  }
}

</mosaic_0001>

<llo_original>
// kernel: tpu_custom_call.1
$region0: #{tpu_custom_call.1}
  #allocation0 [shape = 'u32[]', space=smem, size = 0x4, offset = 0x4, fixed_abs, tag = 'smem constant byte address 0x4 - core index']
  #allocation1 [shape = 'u32[72,128]{1,0:T(1,128)}', space=vmem, size = 0x9000, scoped, tag = 'internal scratch']
  #allocation2 [shape = 'bf16[256,96]{1,0:T(8,128)(2,1)}', space=vmem, size = 0x10000, scoped, tag = 'scratch operand']
  #allocation3 [shape = 'bf16[256,32]{1,0:T(8,128)(2,1)}', space=vmem, size = 0x10000, scoped, tag = 'scratch operand']
  %s0 = inlined_call_operand.vmem [shape: bf16[64,8,32], index: 0, kind: input, shape index: {}]
  %s1 = inlined_call_operand.vmem [shape: bf16[32,96], index: 1, kind: input, shape index: {}]
  %s2 = inlined_call_operand.vmem [shape: f32[1,96], index: 2, kind: input, shape index: {}]
  %s3 = inlined_call_operand.hbm [shape: f32[4,128,128], index: 3, kind: input, shape index: {}]
  %s4 = inlined_call_operand.vmem [shape: bf16[32,32], index: 4, kind: input, shape index: {}]
  %s5 = inlined_call_operand.vmem [shape: f32[1,32], index: 5, kind: input, shape index: {}]
  %s6 = inlined_call_operand.vmem [shape: f32[64,8,32], index: 6, kind: output, shape index: {}]
  %s7 = sld [smem:[#allocation0]]
  $region68: #{tpu_custom_call.1} parent=0
    _
  %s9 = ssub.s32 1, %s7
  %s10 = scalar_select 0, %s9, %s7
  $region1: #{tpu_custom_call.1} parent=0
    #allocation4 [shape = 'u8[262144]{0}', space=vmem, size = 0x40000, scoped, tag = 'input window, operand 3, single buffered']
    #allocation5 [shape = 's32[2]{0}', space=sflag, size = 0x8, scoped, tag = 'scoped memory for tpu_custom_call.1']
    %11 = vsyncpa [#allocation5], 0
    loop: start=0, step=1, limit=4
    $region2: #{tpu_custom_call.1} parent=1 // loop_pre_header
      _
    $region3: #{tpu_custom_call.1} parent=1 // loop_header
      %s13 = sphi 0, %s17
      %p14 = scmp.ge.s32.totalorder %s13, 4
      %s23 = sphi 0, %s25
      %s26 = sphi 0, %s23
      %s27 = sphi 0, %s26
      %s43 = sphi 0, %s27
      %s47 = sphi 0, %s47
      %s49 = sphi 0, %s47
      %s50 = sphi 0, %s49
      %s64 = sphi 0, %s50
      %s68 = sphi 0, %s68
      %s70 = sphi 0, %s68
      %s71 = sphi 0, %s70
      %s85 = sphi 0, %s71
      %s89 = sphi 0, %s89
      %s91 = sphi 0, %s89
      %s92 = sphi 0, %s91
      %s106 = sphi 0, %s92
      %s110 = sphi 0, %s110
      %s112 = sphi 0, %s110
      %s113 = sphi 0, %s112
      %s127 = sphi 0, %s113
      %s131 = sphi 0, %s131
      %s133 = sphi 0, %s131
      %s134 = sphi 0, %s133
      %s148 = sphi 0, %s134
      %s154 = sphi 0, %s156
      %s157 = sphi 0, %s154
      %s158 = sphi 0, %s157
      %s174 = sphi 0, %s158
    $region4: #{tpu_custom_call.1} parent=1 // loop_header_branch
      %16 = sbr.rel (%p14) target = $region8
    $region5: #{tpu_custom_call.1} parent=1 // loop_body
      %s18 = ssub.s32 %s13, 1
      %s19 = ssub.s32 %s13, 2
      %s20 = sadd.s32 %s13, 1
      %s21 = ssub.s32 %s13, %s20
      %p22 = scmp.eq.s32.totalorder %s21, 0
      %s24 = sadd.s32 %s23, 1
      %s25 = scalar_select %p22, %s23, %s24
      %p28 = pneg %p22
      %p29 = scmp.eq.s32.totalorder %s13, 1
      %p30 = por %p28, %p29
      %p31 = scmp.ne.s32.totalorder %s23, %s26
      %p32 = scmp.eq.s32.totalorder %s13, 0
      %p33 = por %p31, %p32
      %p34 = scmp.ne.s32.totalorder %s23, %s26
      %p35 = scmp.eq.s32.totalorder %s18, 1
      %p36 = por %p34, %p35
      %p37 = scmp.ne.s32.totalorder %s26, %s27
      %p38 = scmp.eq.s32.totalorder %s18, 0
      %p39 = por %p37, %p38
      %p40 = scmp.ne.s32.totalorder %s26, %s27
      %p41 = scmp.eq.s32.totalorder %s19, 1
      %p42 = por %p40, %p41
      %p44 = scmp.ne.s32.totalorder %s27, %s43
      %p45 = scmp.eq.s32.totalorder %s19, 0
      %p46 = por %p44, %p45
      %s48 = sadd.s32 %s47, 1
      %p51 = scmp.eq.s32.totalorder %s13, 1
      %p52 = scmp.ne.s32.totalorder %s47, %s49
      %p53 = scmp.eq.s32.totalorder %s13, 0
      %p54 = por %p52, %p53
      %p55 = scmp.ne.s32.totalorder %s47, %s49
      %p56 = scmp.eq.s32.totalorder %s18, 1
      %p57 = por %p55, %p56
      %p58 = scmp.ne.s32.totalorder %s49, %s50
      %p59 = scmp.eq.s32.totalorder %s18, 0
      %p60 = por %p58, %p59
      %p61 = scmp.ne.s32.totalorder %s49, %s50
      %p62 = scmp.eq.s32.totalorder %s19, 1
      %p63 = por %p61, %p62
      %p65 = scmp.ne.s32.totalorder %s50, %s64
      %p66 = scmp.eq.s32.totalorder %s19, 0
      %p67 = por %p65, %p66
      %s69 = sadd.s32 %s68, 1
      %p72 = scmp.eq.s32.totalorder %s13, 1
      %p73 = scmp.ne.s32.totalorder %s68, %s70
      %p74 = scmp.eq.s32.totalorder %s13, 0
      %p75 = por %p73, %p74
      %p76 = scmp.ne.s32.totalorder %s68, %s70
      %p77 = scmp.eq.s32.totalorder %s18, 1
      %p78 = por %p76, %p77
      %p79 = scmp.ne.s32.totalorder %s70, %s71
      %p80 = scmp.eq.s32.totalorder %s18, 0
      %p81 = por %p79, %p80
      %p82 = scmp.ne.s32.totalorder %s70, %s71
      %p83 = scmp.eq.s32.totalorder %s19, 1
      %p84 = por %p82, %p83
      %p86 = scmp.ne.s32.totalorder %s71, %s85
      %p87 = scmp.eq.s32.totalorder %s19, 0
      %p88 = por %p86, %p87
      %s90 = sadd.s32 %s89, 1
      %p93 = scmp.eq.s32.totalorder %s13, 1
      %p94 = scmp.ne.s32.totalorder %s89, %s91
      %p95 = scmp.eq.s32.totalorder %s13, 0
      %p96 = por %p94, %p95
      %p97 = scmp.ne.s32.totalorder %s89, %s91
      %p98 = scmp.eq.s32.totalorder %s18, 1
      %p99 = por %p97, %p98
      %p100 = scmp.ne.s32.totalorder %s91, %s92
      %p101 = scmp.eq.s32.totalorder %s18, 0
      %p102 = por %p100, %p101
      %p103 = scmp.ne.s32.totalorder %s91, %s92
      %p104 = scmp.eq.s32.totalorder %s19, 1
      %p105 = por %p103, %p104
      %p107 = scmp.ne.s32.totalorder %s92, %s106
      %p108 = scmp.eq.s32.totalorder %s19, 0
      %p109 = por %p107, %p108
      %s111 = sadd.s32 %s110, 1
      %p114 = scmp.eq.s32.totalorder %s13, 1
      %p115 = scmp.ne.s32.totalorder %s110, %s112
      %p116 = scmp.eq.s32.totalorder %s13, 0
      %p117 = por %p115, %p116
      %p118 = scmp.ne.s32.totalorder %s110, %s112
      %p119 = scmp.eq.s32.totalorder %s18, 1
      %p120 = por %p118, %p119
      %p121 = scmp.ne.s32.totalorder %s112, %s113
      %p122 = scmp.eq.s32.totalorder %s18, 0
      %p123 = por %p121, %p122
      %p124 = scmp.ne.s32.totalorder %s112, %s113
      %p125 = scmp.eq.s32.totalorder %s19, 1
      %p126 = por %p124, %p125
      %p128 = scmp.ne.s32.totalorder %s113, %s127
      %p129 = scmp.eq.s32.totalorder %s19, 0
      %p130 = por %p128, %p129
      %s132 = sadd.s32 %s131, 1
      %p135 = scmp.eq.s32.totalorder %s13, 1
      %p136 = scmp.ne.s32.totalorder %s131, %s133
      %p137 = scmp.eq.s32.totalorder %s13, 0
      %p138 = por %p136, %p137
      %p139 = scmp.ne.s32.totalorder %s131, %s133
      %p140 = scmp.eq.s32.totalorder %s18, 1
      %p141 = por %p139, %p140
      %p142 = scmp.ne.s32.totalorder %s133, %s134
      %p143 = scmp.eq.s32.totalorder %s18, 0
      %p144 = por %p142, %p143
      %p145 = scmp.ne.s32.totalorder %s133, %s134
      %p146 = scmp.eq.s32.totalorder %s19, 1
      %p147 = por %p145, %p146
      %p149 = scmp.ne.s32.totalorder %s134, %s148
      %p150 = scmp.eq.s32.totalorder %s19, 0
      %p151 = por %p149, %p150
      %s152 = ssub.s32 %s13, %s20
      %p153 = scmp.eq.s32.totalorder %s152, 0
      %s155 = sadd.s32 %s154, 1
      %s156 = scalar_select %p153, %s154, %s155
      %p159 = pneg %p153
      %p160 = scmp.eq.s32.totalorder %s13, 1
      %p161 = por %p159, %p160
      %p162 = scmp.ne.s32.totalorder %s154, %s157
      %p163 = scmp.eq.s32.totalorder %s13, 0
      %p164 = por %p162, %p163
      %p165 = scmp.ne.s32.totalorder %s154, %s157
      %p166 = scmp.eq.s32.totalorder %s18, 1
      %p167 = por %p165, %p166
      %p168 = scmp.ne.s32.totalorder %s157, %s158
      %p169 = scmp.eq.s32.totalorder %s18, 0
      %p170 = por %p168, %p169
      %p171 = scmp.ne.s32.totalorder %s157, %s158
      %p172 = scmp.eq.s32.totalorder %s19, 1
      %p173 = por %p171, %p172
      %p175 = scmp.ne.s32.totalorder %s158, %s174
      %p176 = scmp.eq.s32.totalorder %s19, 0
      %p177 = por %p175, %p176
      %p178 = scmp.le.s32.totalorder 1, %s13
      %p179 = scmp.lt.s32.totalorder %s13, 3
      %p180 = pnand %p178, %p179
      %p181 = pneg %p180
      // Predicated region
      $region9: #{tpu_custom_call.1} parent=5 // pred_check
        _
      $region10: #{tpu_custom_call.1} parent=5 // pred_check_branch
        %183 = sbr.rel (%p180) target = $region12
      $region11: #{tpu_custom_call.1} parent=5 // pred_region
        %s184 = ssub.s32 %s13, 1
        // Predicated region
        $region13: #{tpu_custom_call.1} parent=11 // pred_check
          %p185 = pneg %p60
        $region14: #{tpu_custom_call.1} parent=11 // pred_check_branch
          %187 = sbr.rel (%p185) target = $region16
        $region15: #{tpu_custom_call.1} parent=11 // pred_region
          _
        $region16: #{tpu_custom_call.1} parent=11 // pred_fallthru
          _
        // Predicated region
        $region17: #{tpu_custom_call.1} parent=11 // pred_check
          %p188 = pneg %p81
        $region18: #{tpu_custom_call.1} parent=11 // pred_check_branch
          %190 = sbr.rel (%p188) target = $region20
        $region19: #{tpu_custom_call.1} parent=11 // pred_region
          _
        $region20: #{tpu_custom_call.1} parent=11 // pred_fallthru
          _
        // Predicated region
        $region21: #{tpu_custom_call.1} parent=11 // pred_check
          %p191 = pneg %p102
        $region22: #{tpu_custom_call.1} parent=11 // pred_check_branch
          %193 = sbr.rel (%p191) target = $region24
        $region23: #{tpu_custom_call.1} parent=11 // pred_region
          %195 = vsyncadd [#allocation5], 0
          %s196 = sshll.u32 %s3, 4
          %s197 = int_to_ptr.hbm [resolvable:$true] %s196
          %s198 = sshll.u32 [#allocation4], 4
          %s199 = int_to_ptr.vmem [resolvable:$true] %s198
          %204 = dma.hbm_to_vmem [thread:$0]  %s197, 8192, %s199, [#allocation5], 128, 128, 8
        $region24: #{tpu_custom_call.1} parent=11 // pred_fallthru
          _
        // Predicated region
        $region25: #{tpu_custom_call.1} parent=11 // pred_check
          %p205 = pneg %p123
        $region26: #{tpu_custom_call.1} parent=11 // pred_check_branch
          %207 = sbr.rel (%p205) target = $region28
        $region27: #{tpu_custom_call.1} parent=11 // pred_region
          _
        $region28: #{tpu_custom_call.1} parent=11 // pred_fallthru
          _
        // Predicated region
        $region29: #{tpu_custom_call.1} parent=11 // pred_check
          %p208 = pneg %p144
        $region30: #{tpu_custom_call.1} parent=11 // pred_check_branch
          %210 = sbr.rel (%p208) target = $region32
        $region31: #{tpu_custom_call.1} parent=11 // pred_region
          _
        $region32: #{tpu_custom_call.1} parent=11 // pred_fallthru
          _
      $region12: #{tpu_custom_call.1} parent=5 // pred_fallthru
        _
      %p211 = scmp.lt.s32.totalorder %s13, 2
      // Predicated region
      $region33: #{tpu_custom_call.1} parent=5 // pred_check
        %p212 = pneg %p211
      $region34: #{tpu_custom_call.1} parent=5 // pred_check_branch
        %214 = sbr.rel (%p212) target = $region36
      $region35: #{tpu_custom_call.1} parent=5 // pred_region
        // Predicated region
        $region37: #{tpu_custom_call.1} parent=35 // pred_check
          %p215 = pneg %p33
        $region38: #{tpu_custom_call.1} parent=35 // pred_check_branch
          %217 = sbr.rel (%p215) target = $region40
        $region39: #{tpu_custom_call.1} parent=35 // pred_region
          %s218 = smul.u32 32, %s13
          %p219 = scmp.lt.s32.totalorder %s218, 63
          %s220 = scalar_select %p219, %s218, 63
          %s221 = smul.addr %s220, 4
          %s222 = scalar_lea.vmem %s0, %s221
          %s223 = smul.u32 32, %s13
        $region40: #{tpu_custom_call.1} parent=35 // pred_fallthru
          _
      $region36: #{tpu_custom_call.1} parent=5 // pred_fallthru
        _
      %p224 = scmp.le.s32.totalorder 1, %s13
      %p225 = scmp.lt.s32.totalorder %s13, 3
      %p226 = pnand %p224, %p225
      %p227 = pneg %p226
      // Predicated region
      $region41: #{tpu_custom_call.1} parent=5 // pred_check
        _
      $region42: #{tpu_custom_call.1} parent=5 // pred_check_branch
        %229 = sbr.rel (%p226) target = $region44
      $region43: #{tpu_custom_call.1} parent=5 // pred_region
        %s230 = ssub.s32 %s13, 1
        // Predicated region
        $region45: #{tpu_custom_call.1} parent=43 // pred_check
          %p231 = pneg %p102
        $region46: #{tpu_custom_call.1} parent=43 // pred_check_branch
          %233 = sbr.rel (%p231) target = $region48
        $region47: #{tpu_custom_call.1} parent=43 // pred_region
          %235 = dma.done [#allocation5], 8192
        $region48: #{tpu_custom_call.1} parent=43 // pred_fallthru
          _
        %s236 = smul.u32 32, %s18
        %p237 = scmp.lt.s32.totalorder %s236, 63
        %s238 = scalar_select %p237, %s236, 63
        %s239 = smul.addr %s238, 4
        %s240 = scalar_lea.vmem %s0, %s239
        %p241 = pneg %p39
        %p242 = pneg %p36
        %p243 = pneg %p60
        %p244 = pneg %p57
        %p245 = pneg %p81
        %p246 = pneg %p78
        %p247 = pneg %p102
        %p248 = pneg %p99
        %p249 = pneg %p123
        %p250 = pneg %p120
        %p251 = pneg %p144
        %p252 = pneg %p141
        %p253 = pneg %p170
        %p254 = pneg %p167
        %s255 = smul.u32 32, %s18
        %p256 = scmp.lt.s32.totalorder %s255, 63
        %s257 = scalar_select %p256, %s255, 63
        %s258 = smul.addr %s257, 8
        %s259 = scalar_lea.vmem %s6, %s258
        %s260 = smul.u32 32, %s18
        %p261 = scmp.lt.s32.totalorder %s260, 63
        %s262 = scalar_select %p261, %s260, 63
        %s263 = smul.addr %s262, 4
        %s264 = scalar_lea.vmem %s0, %s263
        %s265 = smul.u32 32, %s18
        %s266 = smul.u32 32, %s18
        %p267 = scmp.lt.s32.totalorder %s266, 63
        %s268 = scalar_select %p267, %s266, 63
        %s269 = smul.addr %s268, 8
        %s270 = scalar_lea.vmem %s6, %s269
        %s271 = smul.u32 32, %s18
        %v273 = vld [vmem:[%s264] sm:$0xf]
        %v274 = vld [vmem:[%s264 + $0x4] sm:$0xf]
        %v275 = vld [vmem:[%s264 + $0x8] sm:$0xf]
        %v276 = vld [vmem:[%s264 + $0xc] sm:$0xf]
        %v277 = vld [vmem:[%s264 + $0x10] sm:$0xf]
        %v278 = vld [vmem:[%s264 + $0x14] sm:$0xf]
        %v279 = vld [vmem:[%s264 + $0x18] sm:$0xf]
        %v280 = vld [vmem:[%s264 + $0x1c] sm:$0xf]
        %v281 = vld [vmem:[%s264 + $0x20] sm:$0xf]
        %v282 = vld [vmem:[%s264 + $0x24] sm:$0xf]
        %v283 = vld [vmem:[%s264 + $0x28] sm:$0xf]
        %v284 = vld [vmem:[%s264 + $0x2c] sm:$0xf]
        %v285 = vld [vmem:[%s264 + $0x30] sm:$0xf]
        %v286 = vld [vmem:[%s264 + $0x34] sm:$0xf]
        %v287 = vld [vmem:[%s264 + $0x38] sm:$0xf]
        %v288 = vld [vmem:[%s264 + $0x3c] sm:$0xf]
        %v289 = vld [vmem:[%s264 + $0x40] sm:$0xf]
        %v290 = vld [vmem:[%s264 + $0x44] sm:$0xf]
        %v291 = vld [vmem:[%s264 + $0x48] sm:$0xf]
        %v292 = vld [vmem:[%s264 + $0x4c] sm:$0xf]
        %v293 = vld [vmem:[%s264 + $0x50] sm:$0xf]
        %v294 = vld [vmem:[%s264 + $0x54] sm:$0xf]
        %v295 = vld [vmem:[%s264 + $0x58] sm:$0xf]
        %v296 = vld [vmem:[%s264 + $0x5c] sm:$0xf]
        %v297 = vld [vmem:[%s264 + $0x60] sm:$0xf]
        %v298 = vld [vmem:[%s264 + $0x64] sm:$0xf]
        %v299 = vld [vmem:[%s264 + $0x68] sm:$0xf]
        %v300 = vld [vmem:[%s264 + $0x6c] sm:$0xf]
        %v301 = vld [vmem:[%s264 + $0x70] sm:$0xf]
        %v302 = vld [vmem:[%s264 + $0x74] sm:$0xf]
        %v303 = vld [vmem:[%s264 + $0x78] sm:$0xf]
        %v304 = vld [vmem:[%s264 + $0x7c] sm:$0xf]
        %v305 = vld [vmem:[%s1] sm:$0xf]
        %v306 = vld [vmem:[%s1 + $0x4] sm:$0xf]
        %v307 = vld [vmem:[%s1 + $0x8] sm:$0xf]
        %v308 = vld [vmem:[%s1 + $0xc] sm:$0xf]
        %v309 = vld [vmem:[%s2] sm:$0x1]
        %v311 = vperm.slane %v309, 0
        %v345 = vunpack.c.l.b16 %v273
        %v346 = vunpack.c.l.b16 %v274
        %v347 = vunpack.c.l.b16 %v275
        %v348 = vunpack.c.l.b16 %v276
        %v349 = vunpack.c.l.b16 %v277
        %v350 = vunpack.c.l.b16 %v278
        %v351 = vunpack.c.l.b16 %v279
        %v352 = vunpack.c.l.b16 %v280
        %v353 = vunpack.c.l.b16 %v281
        %v354 = vunpack.c.l.b16 %v282
        %v355 = vunpack.c.l.b16 %v283
        %v356 = vunpack.c.l.b16 %v284
        %v357 = vunpack.c.l.b16 %v285
        %v358 = vunpack.c.l.b16 %v286
        %v359 = vunpack.c.l.b16 %v287
        %v360 = vunpack.c.l.b16 %v288
        %v361 = vunpack.c.l.b16 %v289
        %v362 = vunpack.c.l.b16 %v290
        %v363 = vunpack.c.l.b16 %v291
        %v364 = vunpack.c.l.b16 %v292
        %v365 = vunpack.c.l.b16 %v293
        %v366 = vunpack.c.l.b16 %v294
        %v367 = vunpack.c.l.b16 %v295
        %v368 = vunpack.c.l.b16 %v296
        %v369 = vunpack.c.l.b16 %v297
        %v370 = vunpack.c.l.b16 %v298
        %v371 = vunpack.c.l.b16 %v299
        %v372 = vunpack.c.l.b16 %v300
        %v373 = vunpack.c.l.b16 %v301
        %v374 = vunpack.c.l.b16 %v302
        %v375 = vunpack.c.l.b16 %v303
        %v376 = vunpack.c.l.b16 %v304
        %v377 = vpack.c.b16 %v346, %v345
        %v378 = vpack.c.b16 %v348, %v347
        %v379 = vpack.c.b16 %v350, %v349
        %v380 = vpack.c.b16 %v352, %v351
        %v381 = vpack.c.b16 %v354, %v353
        %v382 = vpack.c.b16 %v356, %v355
        %v383 = vpack.c.b16 %v358, %v357
        %v384 = vpack.c.b16 %v360, %v359
        %v385 = vpack.c.b16 %v362, %v361
        %v386 = vpack.c.b16 %v364, %v363
        %v387 = vpack.c.b16 %v366, %v365
        %v388 = vpack.c.b16 %v368, %v367
        %v389 = vpack.c.b16 %v370, %v369
        %v390 = vpack.c.b16 %v372, %v371
        %v391 = vpack.c.b16 %v374, %v373
        %v392 = vpack.c.b16 %v376, %v375
        %v397 = vunpack.c.l.b16 %v305
        %v398 = vunpack.c.l.b16 %v306
        %v399 = vunpack.c.l.b16 %v307
        %v400 = vunpack.c.l.b16 %v308
        %v401 = vpack.c.b16 %v398, %v397
        %v402 = vpack.c.b16 %v400, %v399
        %vm405 = vcmask 261120
        %v407 = vsel %vm405, %v377, 0
        %v410 = vsel %vm405, %v378, 0
        %v413 = vsel %vm405, %v379, 0
        %v416 = vsel %vm405, %v380, 0
        %v419 = vsel %vm405, %v381, 0
        %v422 = vsel %vm405, %v382, 0
        %v425 = vsel %vm405, %v383, 0
        %v428 = vsel %vm405, %v384, 0
        %v431 = vsel %vm405, %v385, 0
        %v434 = vsel %vm405, %v386, 0
        %v437 = vsel %vm405, %v387, 0
        %v440 = vsel %vm405, %v388, 0
        %v443 = vsel %vm405, %v389, 0
        %v446 = vsel %vm405, %v390, 0
        %v449 = vsel %vm405, %v391, 0
        %v452 = vsel %vm405, %v392, 0
        %454 = vmatpush.bf16.msra.mxu0 0
        %455 = vmatpush.bf16.msra.mxu0 0
        %456 = vmatpush.bf16.msra.mxu0 0
        %457 = vmatpush.bf16.msra.mxu0 0
        %458 = vmatpush.bf16.msra.mxu0 0
        %459 = vmatpush.bf16.msra.mxu0 0
        %460 = vmatpush.bf16.msra.mxu0 %v402
        %461 = vmatpush.bf16.msra.mxu0 %v401
        %462 = vmatmul.bf16.gmra.mxu0 %v407
        %v463 = vpop.f32.mrf.mxu0
        %v464 = vadd.f32 %v311, %v463
        %v465 = vpop.f32.mrf.mxu0
        %v466 = vadd.f32 %v311, %v465
        %467 = vmatmul.bf16.gmra.mxu0 %v410
        %v468 = vpop.f32.mrf.mxu0
        %v469 = vadd.f32 %v311, %v468
        %v470 = vpop.f32.mrf.mxu0
        %v471 = vadd.f32 %v311, %v470
        %472 = vmatmul.bf16.gmra.mxu0 %v413
        %v473 = vpop.f32.mrf.mxu0
        %v474 = vadd.f32 %v311, %v473
        %v475 = vpop.f32.mrf.mxu0
        %v476 = vadd.f32 %v311, %v475
        %477 = vmatmul.bf16.gmra.mxu0 %v416
        %v478 = vpop.f32.mrf.mxu0
        %v479 = vadd.f32 %v311, %v478
        %v480 = vpop.f32.mrf.mxu0
        %v481 = vadd.f32 %v311, %v480
        %482 = vmatmul.bf16.gmra.mxu0 %v419
        %v483 = vpop.f32.mrf.mxu0
        %v484 = vadd.f32 %v311, %v483
        %v485 = vpop.f32.mrf.mxu0
        %v486 = vadd.f32 %v311, %v485
        %487 = vmatmul.bf16.gmra.mxu0 %v422
        %v488 = vpop.f32.mrf.mxu0
        %v489 = vadd.f32 %v311, %v488
        %v490 = vpop.f32.mrf.mxu0
        %v491 = vadd.f32 %v311, %v490
        %492 = vmatmul.bf16.gmra.mxu0 %v425
        %v493 = vpop.f32.mrf.mxu0
        %v494 = vadd.f32 %v311, %v493
        %v495 = vpop.f32.mrf.mxu0
        %v496 = vadd.f32 %v311, %v495
        %497 = vmatmul.bf16.gmra.mxu0 %v428
        %v498 = vpop.f32.mrf.mxu0
        %v499 = vadd.f32 %v311, %v498
        %v500 = vpop.f32.mrf.mxu0
        %v501 = vadd.f32 %v311, %v500
        %502 = vmatmul.bf16.gmra.mxu0 %v431
        %v503 = vpop.f32.mrf.mxu0
        %v504 = vadd.f32 %v311, %v503
        %v505 = vpop.f32.mrf.mxu0
        %v506 = vadd.f32 %v311, %v505
        %507 = vmatmul.bf16.gmra.mxu0 %v434
        %v508 = vpop.f32.mrf.mxu0
        %v509 = vadd.f32 %v311, %v508
        %v510 = vpop.f32.mrf.mxu0
        %v511 = vadd.f32 %v311, %v510
        %512 = vmatmul.bf16.gmra.mxu0 %v437
        %v513 = vpop.f32.mrf.mxu0
        %v514 = vadd.f32 %v311, %v513
        %v515 = vpop.f32.mrf.mxu0
        %v516 = vadd.f32 %v311, %v515
        %517 = vmatmul.bf16.gmra.mxu0 %v440
        %v518 = vpop.f32.mrf.mxu0
        %v519 = vadd.f32 %v311, %v518
        %v520 = vpop.f32.mrf.mxu0
        %v521 = vadd.f32 %v311, %v520
        %522 = vmatmul.bf16.gmra.mxu0 %v443
        %v523 = vpop.f32.mrf.mxu0
        %v524 = vadd.f32 %v311, %v523
        %v525 = vpop.f32.mrf.mxu0
        %v526 = vadd.f32 %v311, %v525
        %527 = vmatmul.bf16.gmra.mxu0 %v446
        %v528 = vpop.f32.mrf.mxu0
        %v529 = vadd.f32 %v311, %v528
        %v530 = vpop.f32.mrf.mxu0
        %v531 = vadd.f32 %v311, %v530
        %532 = vmatmul.bf16.gmra.mxu0 %v449
        %v533 = vpop.f32.mrf.mxu0
        %v534 = vadd.f32 %v311, %v533
        %v535 = vpop.f32.mrf.mxu0
        %v536 = vadd.f32 %v311, %v535
        %537 = vmatmul.bf16.gmra.mxu0 %v452
        %v538 = vpop.f32.mrf.mxu0
        %v539 = vadd.f32 %v311, %v538
        %v540 = vpop.f32.mrf.mxu0
        %v541 = vadd.f32 %v311, %v540
        %542 = vdwg.mxu0
        %v543 = vpack.c.bf16 %v464, %v464
        %v544 = vpack.c.bf16 %v466, %v466
        %v545 = vpack.c.bf16 %v469, %v469
        %v546 = vpack.c.bf16 %v471, %v471
        %v547 = vpack.c.bf16 %v474, %v474
        %v548 = vpack.c.bf16 %v476, %v476
        %v549 = vpack.c.bf16 %v479, %v479
        %v550 = vpack.c.bf16 %v481, %v481
        %v551 = vpack.c.bf16 %v484, %v484
        %v552 = vpack.c.bf16 %v486, %v486
        %v553 = vpack.c.bf16 %v489, %v489
        %v554 = vpack.c.bf16 %v491, %v491
        %v555 = vpack.c.bf16 %v494, %v494
        %v556 = vpack.c.bf16 %v496, %v496
        %v557 = vpack.c.bf16 %v499, %v499
        %v558 = vpack.c.bf16 %v501, %v501
        %v559 = vpack.c.bf16 %v504, %v504
        %v560 = vpack.c.bf16 %v506, %v506
        %v561 = vpack.c.bf16 %v509, %v509
        %v562 = vpack.c.bf16 %v511, %v511
        %v563 = vpack.c.bf16 %v514, %v514
        %v564 = vpack.c.bf16 %v516, %v516
        %v565 = vpack.c.bf16 %v519, %v519
        %v566 = vpack.c.bf16 %v521, %v521
        %v567 = vpack.c.bf16 %v524, %v524
        %v568 = vpack.c.bf16 %v526, %v526
        %v569 = vpack.c.bf16 %v529, %v529
        %v570 = vpack.c.bf16 %v531, %v531
        %v571 = vpack.c.bf16 %v534, %v534
        %v572 = vpack.c.bf16 %v536, %v536
        %v573 = vpack.c.bf16 %v539, %v539
        %v574 = vpack.c.bf16 %v541, %v541
        %vm575 = vcmask 781312
        %576 = vst.msk [vmem:[#allocation2] sm:$0xf] %vm575, %v543
        %577 = vst.msk [vmem:[#allocation2 + $0x4] sm:$0xf] %vm575, %v544
        %578 = vst.msk [vmem:[#allocation2 + $0x8] sm:$0xf] %vm575, %v545
        %579 = vst.msk [vmem:[#allocation2 + $0xc] sm:$0xf] %vm575, %v546
        %580 = vst.msk [vmem:[#allocation2 + $0x10] sm:$0xf] %vm575, %v547
        %581 = vst.msk [vmem:[#allocation2 + $0x14] sm:$0xf] %vm575, %v548
        %582 = vst.msk [vmem:[#allocation2 + $0x18] sm:$0xf] %vm575, %v549
        %583 = vst.msk [vmem:[#allocation2 + $0x1c] sm:$0xf] %vm575, %v550
        %584 = vst.msk [vmem:[#allocation2 + $0x20] sm:$0xf] %vm575, %v551
        %585 = vst.msk [vmem:[#allocation2 + $0x24] sm:$0xf] %vm575, %v552
        %586 = vst.msk [vmem:[#allocation2 + $0x28] sm:$0xf] %vm575, %v553
        %587 = vst.msk [vmem:[#allocation2 + $0x2c] sm:$0xf] %vm575, %v554
        %588 = vst.msk [vmem:[#allocation2 + $0x30] sm:$0xf] %vm575, %v555
        %589 = vst.msk [vmem:[#allocation2 + $0x34] sm:$0xf] %vm575, %v556
        %590 = vst.msk [vmem:[#allocation2 + $0x38] sm:$0xf] %vm575, %v557
        %591 = vst.msk [vmem:[#allocation2 + $0x3c] sm:$0xf] %vm575, %v558
        %592 = vst.msk [vmem:[#allocation2 + $0x40] sm:$0xf] %vm575, %v559
        %593 = vst.msk [vmem:[#allocation2 + $0x44] sm:$0xf] %vm575, %v560
        %594 = vst.msk [vmem:[#allocation2 + $0x48] sm:$0xf] %vm575, %v561
        %595 = vst.msk [vmem:[#allocation2 + $0x4c] sm:$0xf] %vm575, %v562
        %596 = vst.msk [vmem:[#allocation2 + $0x50] sm:$0xf] %vm575, %v563
        %597 = vst.msk [vmem:[#allocation2 + $0x54] sm:$0xf] %vm575, %v564
        %598 = vst.msk [vmem:[#allocation2 + $0x58] sm:$0xf] %vm575, %v565
        %599 = vst.msk [vmem:[#allocation2 + $0x5c] sm:$0xf] %vm575, %v566
        %600 = vst.msk [vmem:[#allocation2 + $0x60] sm:$0xf] %vm575, %v567
        %601 = vst.msk [vmem:[#allocation2 + $0x64] sm:$0xf] %vm575, %v568
        %602 = vst.msk [vmem:[#allocation2 + $0x68] sm:$0xf] %vm575, %v569
        %603 = vst.msk [vmem:[#allocation2 + $0x6c] sm:$0xf] %vm575, %v570
        %604 = vst.msk [vmem:[#allocation2 + $0x70] sm:$0xf] %vm575, %v571
        %605 = vst.msk [vmem:[#allocation2 + $0x74] sm:$0xf] %vm575, %v572
        %606 = vst.msk [vmem:[#allocation2 + $0x78] sm:$0xf] %vm575, %v573
        %607 = vst.msk [vmem:[#allocation2 + $0x7c] sm:$0xf] %vm575, %v574
        loop: start=0, step=1, limit=2
        $region49: #{tpu_custom_call.1} parent=43 // loop_pre_header
          _
        $region50: #{tpu_custom_call.1} parent=43 // loop_header
          %s609 = sphi 0, %s613
          %p610 = scmp.ge.s32.totalorder %s609, 2
        $region51: #{tpu_custom_call.1} parent=43 // loop_header_branch
          %612 = sbr.rel (%p610) target = $region55
        $region52: #{tpu_custom_call.1} parent=43 // loop_body
          %s614 = smul.u32 %s609, 128
          %s615 = sshra.s32 %s614, 3
          %s616 = sand.u32 %s614, 7
          %s617 = smul.addr %s615, 4
          %s618 = scalar_lea.vmem [#allocation2], %s617
          %v619 = vld [vmem:[%s618] sm:$0xf]
          %v620 = vld [vmem:[%s618 + $0x4] sm:$0xf]
          %v621 = vld [vmem:[%s618 + $0x8] sm:$0xf]
          %v622 = vld [vmem:[%s618 + $0xc] sm:$0xf]
          %v623 = vld [vmem:[%s618 + $0x10] sm:$0xf]
          %v624 = vld [vmem:[%s618 + $0x14] sm:$0xf]
          %v625 = vld [vmem:[%s618 + $0x18] sm:$0xf]
          %v626 = vld [vmem:[%s618 + $0x1c] sm:$0xf]
          %v627 = vld [vmem:[%s618 + $0x20] sm:$0xf]
          %v628 = vld [vmem:[%s618 + $0x24] sm:$0xf]
          %v629 = vld [vmem:[%s618 + $0x28] sm:$0xf]
          %v630 = vld [vmem:[%s618 + $0x2c] sm:$0xf]
          %v631 = vld [vmem:[%s618 + $0x30] sm:$0xf]
          %v632 = vld [vmem:[%s618 + $0x34] sm:$0xf]
          %v633 = vld [vmem:[%s618 + $0x38] sm:$0xf]
          %v634 = vld [vmem:[%s618 + $0x3c] sm:$0xf]
          %v635 = vld [vmem:[#allocation4] sm:$0xff]
          %v636 = vld [vmem:[#allocation4 + $0x8] sm:$0xff]
          %v637 = vld [vmem:[#allocation4 + $0x10] sm:$0xff]
          %v638 = vld [vmem:[#allocation4 + $0x18] sm:$0xff]
          %v639 = vld [vmem:[#allocation4 + $0x20] sm:$0xff]
          %v640 = vld [vmem:[#allocation4 + $0x28] sm:$0xff]
          %v641 = vld [vmem:[#allocation4 + $0x30] sm:$0xff]
          %v642 = vld [vmem:[#allocation4 + $0x38] sm:$0xff]
          %v643 = vld [vmem:[#allocation4 + $0x40] sm:$0xff]
          %v644 = vld [vmem:[#allocation4 + $0x48] sm:$0xff]
          %v645 = vld [vmem:[#allocation4 + $0x50] sm:$0xff]
          %v646 = vld [vmem:[#allocation4 + $0x58] sm:$0xff]
          %v647 = vld [vmem:[#allocation4 + $0x60] sm:$0xff]
          %v648 = vld [vmem:[#allocation4 + $0x68] sm:$0xff]
          %v649 = vld [vmem:[#allocation4 + $0x70] sm:$0xff]
          %v650 = vld [vmem:[#allocation4 + $0x78] sm:$0xff]
          %v667 = vunpack.c.l.b16 %v619
          %v668 = vunpack.c.l.b16 %v620
          %v669 = vunpack.c.l.b16 %v621
          %v670 = vunpack.c.l.b16 %v622
          %v671 = vunpack.c.l.b16 %v623
          %v672 = vunpack.c.l.b16 %v624
          %v673 = vunpack.c.l.b16 %v625
          %v674 = vunpack.c.l.b16 %v626
          %v675 = vunpack.c.l.b16 %v627
          %v676 = vunpack.c.l.b16 %v628
          %v677 = vunpack.c.l.b16 %v629
          %v678 = vunpack.c.l.b16 %v630
          %v679 = vunpack.c.l.b16 %v631
          %v680 = vunpack.c.l.b16 %v632
          %v681 = vunpack.c.l.b16 %v633
          %v682 = vunpack.c.l.b16 %v634
          %v683 = vpack.c.b16 %v668, %v667
          %v684 = vpack.c.b16 %v670, %v669
          %v685 = vpack.c.b16 %v672, %v671
          %v686 = vpack.c.b16 %v674, %v673
          %v687 = vpack.c.b16 %v676, %v675
          %v688 = vpack.c.b16 %v678, %v677
          %v689 = vpack.c.b16 %v680, %v679
          %v690 = vpack.c.b16 %v682, %v681
          %691 = vrot.lane.b32.xlu0 %v683, 96
          %v692 = vpop.permute.xlu0 %691
          %693 = vrot.lane.b32.xlu0 %v684, 96
          %v694 = vpop.permute.xlu0 %693
          %695 = vrot.lane.b32.xlu0 %v685, 96
          %v696 = vpop.permute.xlu0 %695
          %697 = vrot.lane.b32.xlu0 %v686, 96
          %v698 = vpop.permute.xlu0 %697
          %699 = vrot.lane.b32.xlu0 %v687, 96
          %v700 = vpop.permute.xlu0 %699
          %701 = vrot.lane.b32.xlu0 %v688, 96
          %v702 = vpop.permute.xlu0 %701
          %703 = vrot.lane.b32.xlu0 %v689, 96
          %v704 = vpop.permute.xlu0 %703
          %705 = vrot.lane.b32.xlu0 %v690, 96
          %v706 = vpop.permute.xlu0 %705
          %vm707 = vcmask 64512
          %v709 = vsel %vm707, %v683, 0
          %v712 = vsel %vm707, %v684, 0
          %v715 = vsel %vm707, %v685, 0
          %v718 = vsel %vm707, %v686, 0
          %v721 = vsel %vm707, %v687, 0
          %v724 = vsel %vm707, %v688, 0
          %v727 = vsel %vm707, %v689, 0
          %v730 = vsel %vm707, %v690, 0
          %v733 = vsel %vm707, %v692, 0
          %v736 = vsel %vm707, %v694, 0
          %v739 = vsel %vm707, %v696, 0
          %v742 = vsel %vm707, %v698, 0
          %v745 = vsel %vm707, %v700, 0
          %v748 = vsel %vm707, %v702, 0
          %v751 = vsel %vm707, %v704, 0
          %v754 = vsel %vm707, %v706, 0
          %756 = vmatpush.bf16.xpose.msra.mxu0 %v754
          %757 = vmatpush.bf16.xpose.msra.mxu0 %v751
          %758 = vmatpush.bf16.xpose.msra.mxu0 %v748
          %759 = vmatpush.bf16.xpose.msra.mxu0 %v745
          %760 = vmatpush.bf16.xpose.msra.mxu0 %v742
          %761 = vmatpush.bf16.xpose.msra.mxu0 %v739
          %762 = vmatpush.bf16.xpose.msra.mxu0 %v736
          %763 = vmatpush.bf16.xpose.msra.mxu0 %v733
          %764 = vmatmul.bf16.gmra.mxu0 %v709
          %v765 = vpop.f32.mrf.mxu0
          %v766 = vadd.f32 %v635, %v765
          %v767 = vpop.f32.mrf.mxu0
          %v768 = vadd.f32 %v636, %v767
          %769 = vmatmul.bf16.gmra.mxu0 %v712
          %v770 = vpop.f32.mrf.mxu0
          %v771 = vadd.f32 %v637, %v770
          %v772 = vpop.f32.mrf.mxu0
          %v773 = vadd.f32 %v638, %v772
          %774 = vmatmul.bf16.gmra.mxu0 %v715
          %v775 = vpop.f32.mrf.mxu0
          %v776 = vadd.f32 %v639, %v775
          %v777 = vpop.f32.mrf.mxu0
          %v778 = vadd.f32 %v640, %v777
          %779 = vmatmul.bf16.gmra.mxu0 %v718
          %v780 = vpop.f32.mrf.mxu0
          %v781 = vadd.f32 %v641, %v780
          %v782 = vpop.f32.mrf.mxu0
          %v783 = vadd.f32 %v642, %v782
          %784 = vmatmul.bf16.gmra.mxu0 %v721
          %v785 = vpop.f32.mrf.mxu0
          %v786 = vadd.f32 %v643, %v785
          %v787 = vpop.f32.mrf.mxu0
          %v788 = vadd.f32 %v644, %v787
          %789 = vmatmul.bf16.gmra.mxu0 %v724
          %v790 = vpop.f32.mrf.mxu0
          %v791 = vadd.f32 %v645, %v790
          %v792 = vpop.f32.mrf.mxu0
          %v793 = vadd.f32 %v646, %v792
          %794 = vmatmul.bf16.gmra.mxu0 %v727
          %v795 = vpop.f32.mrf.mxu0
          %v796 = vadd.f32 %v647, %v795
          %v797 = vpop.f32.mrf.mxu0
          %v798 = vadd.f32 %v648, %v797
          %799 = vmatmul.bf16.gmra.mxu0 %v730
          %v800 = vpop.f32.mrf.mxu0
          %v801 = vadd.f32 %v649, %v800
          %v802 = vpop.f32.mrf.mxu0
          %v803 = vadd.f32 %v650, %v802
          %804 = vdwg.mxu0
          %805 = vmax.xlane.f32.xlu0 %v766
          %v806 = vpop.xlane.xlu0 %805
          %807 = vmax.xlane.f32.xlu0 %v768
          %v808 = vpop.xlane.xlu0 %807
          %809 = vmax.xlane.f32.xlu0 %v771
          %v810 = vpop.xlane.xlu0 %809
          %811 = vmax.xlane.f32.xlu0 %v773
          %v812 = vpop.xlane.xlu0 %811
          %813 = vmax.xlane.f32.xlu0 %v776
          %v814 = vpop.xlane.xlu0 %813
          %815 = vmax.xlane.f32.xlu0 %v778
          %v816 = vpop.xlane.xlu0 %815
          %817 = vmax.xlane.f32.xlu0 %v781
          %v818 = vpop.xlane.xlu0 %817
          %819 = vmax.xlane.f32.xlu0 %v783
          %v820 = vpop.xlane.xlu0 %819
          %821 = vmax.xlane.f32.xlu0 %v786
          %v822 = vpop.xlane.xlu0 %821
          %823 = vmax.xlane.f32.xlu0 %v788
          %v824 = vpop.xlane.xlu0 %823
          %825 = vmax.xlane.f32.xlu0 %v791
          %v826 = vpop.xlane.xlu0 %825
          %827 = vmax.xlane.f32.xlu0 %v793
          %v828 = vpop.xlane.xlu0 %827
          %829 = vmax.xlane.f32.xlu0 %v796
          %v830 = vpop.xlane.xlu0 %829
          %831 = vmax.xlane.f32.xlu0 %v798
          %v832 = vpop.xlane.xlu0 %831
          %833 = vmax.xlane.f32.xlu0 %v801
          %v834 = vpop.xlane.xlu0 %833
          %835 = vmax.xlane.f32.xlu0 %v803
          %v836 = vpop.xlane.xlu0 %835
          %v837 = vsub.f32 %v766, %v806
          %v838 = vsub.f32 %v768, %v808
          %v839 = vsub.f32 %v771, %v810
          %v840 = vsub.f32 %v773, %v812
          %v841 = vsub.f32 %v776, %v814
          %v842 = vsub.f32 %v778, %v816
          %v843 = vsub.f32 %v781, %v818
          %v844 = vsub.f32 %v783, %v820
          %v845 = vsub.f32 %v786, %v822
          %v846 = vsub.f32 %v788, %v824
          %v847 = vsub.f32 %v791, %v826
          %v848 = vsub.f32 %v793, %v828
          %v849 = vsub.f32 %v796, %v830
          %v850 = vsub.f32 %v798, %v832
          %v851 = vsub.f32 %v801, %v834
          %v852 = vsub.f32 %v803, %v836
          %v853 = vmul.f32 %v837, 1.442695
          %v854 = vpow.pop %v853
          %v855 = vmul.f32 %v838, 1.442695
          %v856 = vpow.pop %v855
          %v857 = vmul.f32 %v839, 1.442695
          %v858 = vpow.pop %v857
          %v859 = vmul.f32 %v840, 1.442695
          %v860 = vpow.pop %v859
          %v861 = vmul.f32 %v841, 1.442695
          %v862 = vpow.pop %v861
          %v863 = vmul.f32 %v842, 1.442695
          %v864 = vpow.pop %v863
          %v865 = vmul.f32 %v843, 1.442695
          %v866 = vpow.pop %v865
          %v867 = vmul.f32 %v844, 1.442695
          %v868 = vpow.pop %v867
          %v869 = vmul.f32 %v845, 1.442695
          %v870 = vpow.pop %v869
          %v871 = vmul.f32 %v846, 1.442695
          %v872 = vpow.pop %v871
          %v873 = vmul.f32 %v847, 1.442695
          %v874 = vpow.pop %v873
          %v875 = vmul.f32 %v848, 1.442695
          %v876 = vpow.pop %v875
          %v877 = vmul.f32 %v849, 1.442695
          %v878 = vpow.pop %v877
          %v879 = vmul.f32 %v850, 1.442695
          %v880 = vpow.pop %v879
          %v881 = vmul.f32 %v851, 1.442695
          %v882 = vpow.pop %v881
          %v883 = vmul.f32 %v852, 1.442695
          %v884 = vpow.pop %v883
          %885 = vadd.xlane.f32.xlu0 %v854
          %v886 = vpop.xlane.xlu0 %885
          %887 = vadd.xlane.f32.xlu0 %v856
          %v888 = vpop.xlane.xlu0 %887
          %889 = vadd.xlane.f32.xlu0 %v858
          %v890 = vpop.xlane.xlu0 %889
          %891 = vadd.xlane.f32.xlu0 %v860
          %v892 = vpop.xlane.xlu0 %891
          %893 = vadd.xlane.f32.xlu0 %v862
          %v894 = vpop.xlane.xlu0 %893
          %895 = vadd.xlane.f32.xlu0 %v864
          %v896 = vpop.xlane.xlu0 %895
          %897 = vadd.xlane.f32.xlu0 %v866
          %v898 = vpop.xlane.xlu0 %897
          %899 = vadd.xlane.f32.xlu0 %v868
          %v900 = vpop.xlane.xlu0 %899
          %901 = vadd.xlane.f32.xlu0 %v870
          %v902 = vpop.xlane.xlu0 %901
          %903 = vadd.xlane.f32.xlu0 %v872
          %v904 = vpop.xlane.xlu0 %903
          %905 = vadd.xlane.f32.xlu0 %v874
          %v906 = vpop.xlane.xlu0 %905
          %907 = vadd.xlane.f32.xlu0 %v876
          %v908 = vpop.xlane.xlu0 %907
          %909 = vadd.xlane.f32.xlu0 %v878
          %v910 = vpop.xlane.xlu0 %909
          %911 = vadd.xlane.f32.xlu0 %v880
          %v912 = vpop.xlane.xlu0 %911
          %913 = vadd.xlane.f32.xlu0 %v882
          %v914 = vpop.xlane.xlu0 %913
          %915 = vadd.xlane.f32.xlu0 %v884
          %v916 = vpop.xlane.xlu0 %915
          %v917 = vrcp.pop %v886
          %v918 = vrcp.pop %v888
          %v919 = vrcp.pop %v890
          %v920 = vrcp.pop %v892
          %v921 = vrcp.pop %v894
          %v922 = vrcp.pop %v896
          %v923 = vrcp.pop %v898
          %v924 = vrcp.pop %v900
          %v925 = vrcp.pop %v902
          %v926 = vrcp.pop %v904
          %v927 = vrcp.pop %v906
          %v928 = vrcp.pop %v908
          %v929 = vrcp.pop %v910
          %v930 = vrcp.pop %v912
          %v931 = vrcp.pop %v914
          %v932 = vrcp.pop %v916
          %v933 = vmul.f32 %v854, %v917
          %v934 = vmul.f32 %v856, %v918
          %v935 = vmul.f32 %v858, %v919
          %v936 = vmul.f32 %v860, %v920
          %v937 = vmul.f32 %v862, %v921
          %v938 = vmul.f32 %v864, %v922
          %v939 = vmul.f32 %v866, %v923
          %v940 = vmul.f32 %v868, %v924
          %v941 = vmul.f32 %v870, %v925
          %v942 = vmul.f32 %v872, %v926
          %v943 = vmul.f32 %v874, %v927
          %v944 = vmul.f32 %v876, %v928
          %v945 = vmul.f32 %v878, %v929
          %v946 = vmul.f32 %v880, %v930
          %v947 = vmul.f32 %v882, %v931
          %v948 = vmul.f32 %v884, %v932
          %v949 = vpack.c.bf16 %v934, %v933
          %v950 = vpack.c.bf16 %v936, %v935
          %v951 = vpack.c.bf16 %v938, %v937
          %v952 = vpack.c.bf16 %v940, %v939
          %v953 = vpack.c.bf16 %v942, %v941
          %v954 = vpack.c.bf16 %v944, %v943
          %v955 = vpack.c.bf16 %v946, %v945
          %v956 = vpack.c.bf16 %v948, %v947
          %957 = vrot.lane.b32.xlu0 %v683, 64
          %v958 = vpop.permute.xlu0 %957
          %959 = vrot.lane.b32.xlu0 %v684, 64
          %v960 = vpop.permute.xlu0 %959
          %961 = vrot.lane.b32.xlu0 %v685, 64
          %v962 = vpop.permute.xlu0 %961
          %963 = vrot.lane.b32.xlu0 %v686, 64
          %v964 = vpop.permute.xlu0 %963
          %965 = vrot.lane.b32.xlu0 %v687, 64
          %v966 = vpop.permute.xlu0 %965
          %967 = vrot.lane.b32.xlu0 %v688, 64
          %v968 = vpop.permute.xlu0 %967
          %969 = vrot.lane.b32.xlu0 %v689, 64
          %v970 = vpop.permute.xlu0 %969
          %971 = vrot.lane.b32.xlu0 %v690, 64
          %v972 = vpop.permute.xlu0 %971
          %981 = vmatpush.bf16.msra.mxu0 %v972
          %982 = vmatpush.bf16.msra.mxu0 %v970
          %983 = vmatpush.bf16.msra.mxu0 %v968
          %984 = vmatpush.bf16.msra.mxu0 %v966
          %985 = vmatpush.bf16.msra.mxu0 %v964
          %986 = vmatpush.bf16.msra.mxu0 %v962
          %987 = vmatpush.bf16.msra.mxu0 %v960
          %988 = vmatpush.bf16.msra.mxu0 %v958
          %989 = vmatmul.bf16.gmra.mxu0 %v949
          %v990 = vpop.f32.mrf.mxu0
          %v991 = vadd.f32 0.0, %v990
          %v992 = vpop.f32.mrf.mxu0
          %v993 = vadd.f32 0.0, %v992
          %994 = vmatmul.bf16.gmra.mxu0 %v950
          %v995 = vpop.f32.mrf.mxu0
          %v996 = vadd.f32 0.0, %v995
          %v997 = vpop.f32.mrf.mxu0
          %v998 = vadd.f32 0.0, %v997
          %999 = vmatmul.bf16.gmra.mxu0 %v951
          %v1000 = vpop.f32.mrf.mxu0
          %v1001 = vadd.f32 0.0, %v1000
          %v1002 = vpop.f32.mrf.mxu0
          %v1003 = vadd.f32 0.0, %v1002
          %1004 = vmatmul.bf16.gmra.mxu0 %v952
          %v1005 = vpop.f32.mrf.mxu0
          %v1006 = vadd.f32 0.0, %v1005
          %v1007 = vpop.f32.mrf.mxu0
          %v1008 = vadd.f32 0.0, %v1007
          %1009 = vmatmul.bf16.gmra.mxu0 %v953
          %v1010 = vpop.f32.mrf.mxu0
          %v1011 = vadd.f32 0.0, %v1010
          %v1012 = vpop.f32.mrf.mxu0
          %v1013 = vadd.f32 0.0, %v1012
          %1014 = vmatmul.bf16.gmra.mxu0 %v954
          %v1015 = vpop.f32.mrf.mxu0
          %v1016 = vadd.f32 0.0, %v1015
          %v1017 = vpop.f32.mrf.mxu0
          %v1018 = vadd.f32 0.0, %v1017
          %1019 = vmatmul.bf16.gmra.mxu0 %v955
          %v1020 = vpop.f32.mrf.mxu0
          %v1021 = vadd.f32 0.0, %v1020
          %v1022 = vpop.f32.mrf.mxu0
          %v1023 = vadd.f32 0.0, %v1022
          %1024 = vmatmul.bf16.gmra.mxu0 %v956
          %v1025 = vpop.f32.mrf.mxu0
          %v1026 = vadd.f32 0.0, %v1025
          %v1027 = vpop.f32.mrf.mxu0
          %v1028 = vadd.f32 0.0, %v1027
          %1029 = vdwg.mxu0
          %s1030 = scalar_lea.vmem [#allocation4], 128
          %v1031 = vld [vmem:[%s1030] sm:$0xff]
          %v1032 = vld [vmem:[%s1030 + $0x8] sm:$0xff]
          %v1033 = vld [vmem:[%s1030 + $0x10] sm:$0xff]
          %v1034 = vld [vmem:[%s1030 + $0x18] sm:$0xff]
          %v1035 = vld [vmem:[%s1030 + $0x20] sm:$0xff]
          %v1036 = vld [vmem:[%s1030 + $0x28] sm:$0xff]
          %v1037 = vld [vmem:[%s1030 + $0x30] sm:$0xff]
          %v1038 = vld [vmem:[%s1030 + $0x38] sm:$0xff]
          %v1039 = vld [vmem:[%s1030 + $0x40] sm:$0xff]
          %v1040 = vld [vmem:[%s1030 + $0x48] sm:$0xff]
          %v1041 = vld [vmem:[%s1030 + $0x50] sm:$0xff]
          %v1042 = vld [vmem:[%s1030 + $0x58] sm:$0xff]
          %v1043 = vld [vmem:[%s1030 + $0x60] sm:$0xff]
          %v1044 = vld [vmem:[%s1030 + $0x68] sm:$0xff]
          %v1045 = vld [vmem:[%s1030 + $0x70] sm:$0xff]
          %v1046 = vld [vmem:[%s1030 + $0x78] sm:$0xff]
          %1047 = vrot.lane.b32.xlu0 %v683, 120
          %v1048 = vpop.permute.xlu0 %1047
          %1049 = vrot.lane.b32.xlu0 %v684, 120
          %v1050 = vpop.permute.xlu0 %1049
          %1051 = vrot.lane.b32.xlu0 %v685, 120
          %v1052 = vpop.permute.xlu0 %1051
          %1053 = vrot.lane.b32.xlu0 %v686, 120
          %v1054 = vpop.permute.xlu0 %1053
          %1055 = vrot.lane.b32.xlu0 %v687, 120
          %v1056 = vpop.permute.xlu0 %1055
          %1057 = vrot.lane.b32.xlu0 %v688, 120
          %v1058 = vpop.permute.xlu0 %1057
          %1059 = vrot.lane.b32.xlu0 %v689, 120
          %v1060 = vpop.permute.xlu0 %1059
          %1061 = vrot.lane.b32.xlu0 %v690, 120
          %v1062 = vpop.permute.xlu0 %1061
          %1063 = vrot.lane.b32.xlu0 %v683, 88
          %v1064 = vpop.permute.xlu0 %1063
          %1065 = vrot.lane.b32.xlu0 %v684, 88
          %v1066 = vpop.permute.xlu0 %1065
          %1067 = vrot.lane.b32.xlu0 %v685, 88
          %v1068 = vpop.permute.xlu0 %1067
          %1069 = vrot.lane.b32.xlu0 %v686, 88
          %v1070 = vpop.permute.xlu0 %1069
          %1071 = vrot.lane.b32.xlu0 %v687, 88
          %v1072 = vpop.permute.xlu0 %1071
          %1073 = vrot.lane.b32.xlu0 %v688, 88
          %v1074 = vpop.permute.xlu0 %1073
          %1075 = vrot.lane.b32.xlu0 %v689, 88
          %v1076 = vpop.permute.xlu0 %1075
          %1077 = vrot.lane.b32.xlu0 %v690, 88
          %v1078 = vpop.permute.xlu0 %1077
          %v1080 = vsel %vm707, %v1048, 0
          %v1083 = vsel %vm707, %v1050, 0
          %v1086 = vsel %vm707, %v1052, 0
          %v1089 = vsel %vm707, %v1054, 0
          %v1092 = vsel %vm707, %v1056, 0
          %v1095 = vsel %vm707, %v1058, 0
          %v1098 = vsel %vm707, %v1060, 0
          %v1101 = vsel %vm707, %v1062, 0
          %v1104 = vsel %vm707, %v1064, 0
          %v1107 = vsel %vm707, %v1066, 0
          %v1110 = vsel %vm707, %v1068, 0
          %v1113 = vsel %vm707, %v1070, 0
          %v1116 = vsel %vm707, %v1072, 0
          %v1119 = vsel %vm707, %v1074, 0
          %v1122 = vsel %vm707, %v1076, 0
          %v1125 = vsel %vm707, %v1078, 0
          %1127 = vmatpush.bf16.xpose.msra.mxu0 %v1125
          %1128 = vmatpush.bf16.xpose.msra.mxu0 %v1122
          %1129 = vmatpush.bf16.xpose.msra.mxu0 %v1119
          %1130 = vmatpush.bf16.xpose.msra.mxu0 %v1116
          %1131 = vmatpush.bf16.xpose.msra.mxu0 %v1113
          %1132 = vmatpush.bf16.xpose.msra.mxu0 %v1110
          %1133 = vmatpush.bf16.xpose.msra.mxu0 %v1107
          %1134 = vmatpush.bf16.xpose.msra.mxu0 %v1104
          %1135 = vmatmul.bf16.gmra.mxu0 %v1080
          %v1136 = vpop.f32.mrf.mxu0
          %v1137 = vadd.f32 %v1031, %v1136
          %v1138 = vpop.f32.mrf.mxu0
          %v1139 = vadd.f32 %v1032, %v1138
          %1140 = vmatmul.bf16.gmra.mxu0 %v1083
          %v1141 = vpop.f32.mrf.mxu0
          %v1142 = vadd.f32 %v1033, %v1141
          %v1143 = vpop.f32.mrf.mxu0
          %v1144 = vadd.f32 %v1034, %v1143
          %1145 = vmatmul.bf16.gmra.mxu0 %v1086
          %v1146 = vpop.f32.mrf.mxu0
          %v1147 = vadd.f32 %v1035, %v1146
          %v1148 = vpop.f32.mrf.mxu0
          %v1149 = vadd.f32 %v1036, %v1148
          %1150 = vmatmul.bf16.gmra.mxu0 %v1089
          %v1151 = vpop.f32.mrf.mxu0
          %v1152 = vadd.f32 %v1037, %v1151
          %v1153 = vpop.f32.mrf.mxu0
          %v1154 = vadd.f32 %v1038, %v1153
          %1155 = vmatmul.bf16.gmra.mxu0 %v1092
          %v1156 = vpop.f32.mrf.mxu0
          %v1157 = vadd.f32 %v1039, %v1156
          %v1158 = vpop.f32.mrf.mxu0
          %v1159 = vadd.f32 %v1040, %v1158
          %1160 = vmatmul.bf16.gmra.mxu0 %v1095
          %v1161 = vpop.f32.mrf.mxu0
          %v1162 = vadd.f32 %v1041, %v1161
          %v1163 = vpop.f32.mrf.mxu0
          %v1164 = vadd.f32 %v1042, %v1163
          %1165 = vmatmul.bf16.gmra.mxu0 %v1098
          %v1166 = vpop.f32.mrf.mxu0
          %v1167 = vadd.f32 %v1043, %v1166
          %v1168 = vpop.f32.mrf.mxu0
          %v1169 = vadd.f32 %v1044, %v1168
          %1170 = vmatmul.bf16.gmra.mxu0 %v1101
          %v1171 = vpop.f32.mrf.mxu0
          %v1172 = vadd.f32 %v1045, %v1171
          %v1173 = vpop.f32.mrf.mxu0
          %v1174 = vadd.f32 %v1046, %v1173
          %1175 = vdwg.mxu0
          %1176 = vmax.xlane.f32.xlu0 %v1137
          %v1177 = vpop.xlane.xlu0 %1176
          %1178 = vmax.xlane.f32.xlu0 %v1139
          %v1179 = vpop.xlane.xlu0 %1178
          %1180 = vmax.xlane.f32.xlu0 %v1142
          %v1181 = vpop.xlane.xlu0 %1180
          %1182 = vmax.xlane.f32.xlu0 %v1144
          %v1183 = vpop.xlane.xlu0 %1182
          %1184 = vmax.xlane.f32.xlu0 %v1147
          %v1185 = vpop.xlane.xlu0 %1184
          %1186 = vmax.xlane.f32.xlu0 %v1149
          %v1187 = vpop.xlane.xlu0 %1186
          %1188 = vmax.xlane.f32.xlu0 %v1152
          %v1189 = vpop.xlane.xlu0 %1188
          %1190 = vmax.xlane.f32.xlu0 %v1154
          %v1191 = vpop.xlane.xlu0 %1190
          %1192 = vmax.xlane.f32.xlu0 %v1157
          %v1193 = vpop.xlane.xlu0 %1192
          %1194 = vmax.xlane.f32.xlu0 %v1159
          %v1195 = vpop.xlane.xlu0 %1194
          %1196 = vmax.xlane.f32.xlu0 %v1162
          %v1197 = vpop.xlane.xlu0 %1196
          %1198 = vmax.xlane.f32.xlu0 %v1164
          %v1199 = vpop.xlane.xlu0 %1198
          %1200 = vmax.xlane.f32.xlu0 %v1167
          %v1201 = vpop.xlane.xlu0 %1200
          %1202 = vmax.xlane.f32.xlu0 %v1169
          %v1203 = vpop.xlane.xlu0 %1202
          %1204 = vmax.xlane.f32.xlu0 %v1172
          %v1205 = vpop.xlane.xlu0 %1204
          %1206 = vmax.xlane.f32.xlu0 %v1174
          %v1207 = vpop.xlane.xlu0 %1206
          %v1208 = vsub.f32 %v1137, %v1177
          %v1209 = vsub.f32 %v1139, %v1179
          %v1210 = vsub.f32 %v1142, %v1181
          %v1211 = vsub.f32 %v1144, %v1183
          %v1212 = vsub.f32 %v1147, %v1185
          %v1213 = vsub.f32 %v1149, %v1187
          %v1214 = vsub.f32 %v1152, %v1189
          %v1215 = vsub.f32 %v1154, %v1191
          %v1216 = vsub.f32 %v1157, %v1193
          %v1217 = vsub.f32 %v1159, %v1195
          %v1218 = vsub.f32 %v1162, %v1197
          %v1219 = vsub.f32 %v1164, %v1199
          %v1220 = vsub.f32 %v1167, %v1201
          %v1221 = vsub.f32 %v1169, %v1203
          %v1222 = vsub.f32 %v1172, %v1205
          %v1223 = vsub.f32 %v1174, %v1207
          %v1224 = vmul.f32 %v1208, 1.442695
          %v1225 = vpow.pop %v1224
          %v1226 = vmul.f32 %v1209, 1.442695
          %v1227 = vpow.pop %v1226
          %v1228 = vmul.f32 %v1210, 1.442695
          %v1229 = vpow.pop %v1228
          %v1230 = vmul.f32 %v1211, 1.442695
          %v1231 = vpow.pop %v1230
          %v1232 = vmul.f32 %v1212, 1.442695
          %v1233 = vpow.pop %v1232
          %v1234 = vmul.f32 %v1213, 1.442695
          %v1235 = vpow.pop %v1234
          %v1236 = vmul.f32 %v1214, 1.442695
          %v1237 = vpow.pop %v1236
          %v1238 = vmul.f32 %v1215, 1.442695
          %v1239 = vpow.pop %v1238
          %v1240 = vmul.f32 %v1216, 1.442695
          %v1241 = vpow.pop %v1240
          %v1242 = vmul.f32 %v1217, 1.442695
          %v1243 = vpow.pop %v1242
          %v1244 = vmul.f32 %v1218, 1.442695
          %v1245 = vpow.pop %v1244
          %v1246 = vmul.f32 %v1219, 1.442695
          %v1247 = vpow.pop %v1246
          %v1248 = vmul.f32 %v1220, 1.442695
          %v1249 = vpow.pop %v1248
          %v1250 = vmul.f32 %v1221, 1.442695
          %v1251 = vpow.pop %v1250
          %v1252 = vmul.f32 %v1222, 1.442695
          %v1253 = vpow.pop %v1252
          %v1254 = vmul.f32 %v1223, 1.442695
          %v1255 = vpow.pop %v1254
          %1256 = vadd.xlane.f32.xlu0 %v1225
          %v1257 = vpop.xlane.xlu0 %1256
          %1258 = vadd.xlane.f32.xlu0 %v1227
          %v1259 = vpop.xlane.xlu0 %1258
          %1260 = vadd.xlane.f32.xlu0 %v1229
          %v1261 = vpop.xlane.xlu0 %1260
          %1262 = vadd.xlane.f32.xlu0 %v1231
          %v1263 = vpop.xlane.xlu0 %1262
          %1264 = vadd.xlane.f32.xlu0 %v1233
          %v1265 = vpop.xlane.xlu0 %1264
          %1266 = vadd.xlane.f32.xlu0 %v1235
          %v1267 = vpop.xlane.xlu0 %1266
          %1268 = vadd.xlane.f32.xlu0 %v1237
          %v1269 = vpop.xlane.xlu0 %1268
          %1270 = vadd.xlane.f32.xlu0 %v1239
          %v1271 = vpop.xlane.xlu0 %1270
          %1272 = vadd.xlane.f32.xlu0 %v1241
          %v1273 = vpop.xlane.xlu0 %1272
          %1274 = vadd.xlane.f32.xlu0 %v1243
          %v1275 = vpop.xlane.xlu0 %1274
          %1276 = vadd.xlane.f32.xlu0 %v1245
          %v1277 = vpop.xlane.xlu0 %1276
          %1278 = vadd.xlane.f32.xlu0 %v1247
          %v1279 = vpop.xlane.xlu0 %1278
          %1280 = vadd.xlane.f32.xlu0 %v1249
          %v1281 = vpop.xlane.xlu0 %1280
          %1282 = vadd.xlane.f32.xlu0 %v1251
          %v1283 = vpop.xlane.xlu0 %1282
          %1284 = vadd.xlane.f32.xlu0 %v1253
          %v1285 = vpop.xlane.xlu0 %1284
          %1286 = vadd.xlane.f32.xlu0 %v1255
          %v1287 = vpop.xlane.xlu0 %1286
          %v1288 = vrcp.pop %v1257
          %v1289 = vrcp.pop %v1259
          %v1290 = vrcp.pop %v1261
          %v1291 = vrcp.pop %v1263
          %v1292 = vrcp.pop %v1265
          %v1293 = vrcp.pop %v1267
          %v1294 = vrcp.pop %v1269
          %v1295 = vrcp.pop %v1271
          %v1296 = vrcp.pop %v1273
          %v1297 = vrcp.pop %v1275
          %v1298 = vrcp.pop %v1277
          %v1299 = vrcp.pop %v1279
          %v1300 = vrcp.pop %v1281
          %v1301 = vrcp.pop %v1283
          %v1302 = vrcp.pop %v1285
          %v1303 = vrcp.pop %v1287
          %v1304 = vmul.f32 %v1225, %v1288
          %v1305 = vmul.f32 %v1227, %v1289
          %v1306 = vmul.f32 %v1229, %v1290
          %v1307 = vmul.f32 %v1231, %v1291
          %v1308 = vmul.f32 %v1233, %v1292
          %v1309 = vmul.f32 %v1235, %v1293
          %v1310 = vmul.f32 %v1237, %v1294
          %v1311 = vmul.f32 %v1239, %v1295
          %v1312 = vmul.f32 %v1241, %v1296
          %v1313 = vmul.f32 %v1243, %v1297
          %v1314 = vmul.f32 %v1245, %v1298
          %v1315 = vmul.f32 %v1247, %v1299
          %v1316 = vmul.f32 %v1249, %v1300
          %v1317 = vmul.f32 %v1251, %v1301
          %v1318 = vmul.f32 %v1253, %v1302
          %v1319 = vmul.f32 %v1255, %v1303
          %v1320 = vpack.c.bf16 %v1305, %v1304
          %v1321 = vpack.c.bf16 %v1307, %v1306
          %v1322 = vpack.c.bf16 %v1309, %v1308
          %v1323 = vpack.c.bf16 %v1311, %v1310
          %v1324 = vpack.c.bf16 %v1313, %v1312
          %v1325 = vpack.c.bf16 %v1315, %v1314
          %v1326 = vpack.c.bf16 %v1317, %v1316
          %v1327 = vpack.c.bf16 %v1319, %v1318
          %1328 = vrot.lane.b32.xlu0 %v683, 56
          %v1329 = vpop.permute.xlu0 %1328
          %1330 = vrot.lane.b32.xlu0 %v684, 56
          %v1331 = vpop.permute.xlu0 %1330
          %1332 = vrot.lane.b32.xlu0 %v685, 56
          %v1333 = vpop.permute.xlu0 %1332
          %1334 = vrot.lane.b32.xlu0 %v686, 56
          %v1335 = vpop.permute.xlu0 %1334
          %1336 = vrot.lane.b32.xlu0 %v687, 56
          %v1337 = vpop.permute.xlu0 %1336
          %1338 = vrot.lane.b32.xlu0 %v688, 56
          %v1339 = vpop.permute.xlu0 %1338
          %1340 = vrot.lane.b32.xlu0 %v689, 56
          %v1341 = vpop.permute.xlu0 %1340
          %1342 = vrot.lane.b32.xlu0 %v690, 56
          %v1343 = vpop.permute.xlu0 %1342
          %1352 = vmatpush.bf16.msra.mxu0 %v1343
          %1353 = vmatpush.bf16.msra.mxu0 %v1341
          %1354 = vmatpush.bf16.msra.mxu0 %v1339
          %1355 = vmatpush.bf16.msra.mxu0 %v1337
          %1356 = vmatpush.bf16.msra.mxu0 %v1335
          %1357 = vmatpush.bf16.msra.mxu0 %v1333
          %1358 = vmatpush.bf16.msra.mxu0 %v1331
          %1359 = vmatpush.bf16.msra.mxu0 %v1329
          %1360 = vmatmul.bf16.gmra.mxu0 %v1320
          %v1361 = vpop.f32.mrf.mxu0
          %v1362 = vadd.f32 0.0, %v1361
          %v1363 = vpop.f32.mrf.mxu0
          %v1364 = vadd.f32 0.0, %v1363
          %1365 = vmatmul.bf16.gmra.mxu0 %v1321
          %v1366 = vpop.f32.mrf.mxu0
          %v1367 = vadd.f32 0.0, %v1366
          %v1368 = vpop.f32.mrf.mxu0
          %v1369 = vadd.f32 0.0, %v1368
          %1370 = vmatmul.bf16.gmra.mxu0 %v1322
          %v1371 = vpop.f32.mrf.mxu0
          %v1372 = vadd.f32 0.0, %v1371
          %v1373 = vpop.f32.mrf.mxu0
          %v1374 = vadd.f32 0.0, %v1373
          %1375 = vmatmul.bf16.gmra.mxu0 %v1323
          %v1376 = vpop.f32.mrf.mxu0
          %v1377 = vadd.f32 0.0, %v1376
          %v1378 = vpop.f32.mrf.mxu0
          %v1379 = vadd.f32 0.0, %v1378
          %1380 = vmatmul.bf16.gmra.mxu0 %v1324
          %v1381 = vpop.f32.mrf.mxu0
          %v1382 = vadd.f32 0.0, %v1381
          %v1383 = vpop.f32.mrf.mxu0
          %v1384 = vadd.f32 0.0, %v1383
          %1385 = vmatmul.bf16.gmra.mxu0 %v1325
          %v1386 = vpop.f32.mrf.mxu0
          %v1387 = vadd.f32 0.0, %v1386
          %v1388 = vpop.f32.mrf.mxu0
          %v1389 = vadd.f32 0.0, %v1388
          %1390 = vmatmul.bf16.gmra.mxu0 %v1326
          %v1391 = vpop.f32.mrf.mxu0
          %v1392 = vadd.f32 0.0, %v1391
          %v1393 = vpop.f32.mrf.mxu0
          %v1394 = vadd.f32 0.0, %v1393
          %1395 = vmatmul.bf16.gmra.mxu0 %v1327
          %v1396 = vpop.f32.mrf.mxu0
          %v1397 = vadd.f32 0.0, %v1396
          %v1398 = vpop.f32.mrf.mxu0
          %v1399 = vadd.f32 0.0, %v1398
          %1400 = vdwg.mxu0
          %s1401 = scalar_lea.vmem [#allocation4], 256
          %v1402 = vld [vmem:[%s1401] sm:$0xff]
          %v1403 = vld [vmem:[%s1401 + $0x8] sm:$0xff]
          %v1404 = vld [vmem:[%s1401 + $0x10] sm:$0xff]
          %v1405 = vld [vmem:[%s1401 + $0x18] sm:$0xff]
          %v1406 = vld [vmem:[%s1401 + $0x20] sm:$0xff]
          %v1407 = vld [vmem:[%s1401 + $0x28] sm:$0xff]
          %v1408 = vld [vmem:[%s1401 + $0x30] sm:$0xff]
          %v1409 = vld [vmem:[%s1401 + $0x38] sm:$0xff]
          %v1410 = vld [vmem:[%s1401 + $0x40] sm:$0xff]
          %v1411 = vld [vmem:[%s1401 + $0x48] sm:$0xff]
          %v1412 = vld [vmem:[%s1401 + $0x50] sm:$0xff]
          %v1413 = vld [vmem:[%s1401 + $0x58] sm:$0xff]
          %v1414 = vld [vmem:[%s1401 + $0x60] sm:$0xff]
          %v1415 = vld [vmem:[%s1401 + $0x68] sm:$0xff]
          %v1416 = vld [vmem:[%s1401 + $0x70] sm:$0xff]
          %v1417 = vld [vmem:[%s1401 + $0x78] sm:$0xff]
          %1418 = vrot.lane.b32.xlu0 %v683, 112
          %v1419 = vpop.permute.xlu0 %1418
          %1420 = vrot.lane.b32.xlu0 %v684, 112
          %v1421 = vpop.permute.xlu0 %1420
          %1422 = vrot.lane.b32.xlu0 %v685, 112
          %v1423 = vpop.permute.xlu0 %1422
          %1424 = vrot.lane.b32.xlu0 %v686, 112
          %v1425 = vpop.permute.xlu0 %1424
          %1426 = vrot.lane.b32.xlu0 %v687, 112
          %v1427 = vpop.permute.xlu0 %1426
          %1428 = vrot.lane.b32.xlu0 %v688, 112
          %v1429 = vpop.permute.xlu0 %1428
          %1430 = vrot.lane.b32.xlu0 %v689, 112
          %v1431 = vpop.permute.xlu0 %1430
          %1432 = vrot.lane.b32.xlu0 %v690, 112
          %v1433 = vpop.permute.xlu0 %1432
          %1434 = vrot.lane.b32.xlu0 %v683, 80
          %v1435 = vpop.permute.xlu0 %1434
          %1436 = vrot.lane.b32.xlu0 %v684, 80
          %v1437 = vpop.permute.xlu0 %1436
          %1438 = vrot.lane.b32.xlu0 %v685, 80
          %v1439 = vpop.permute.xlu0 %1438
          %1440 = vrot.lane.b32.xlu0 %v686, 80
          %v1441 = vpop.permute.xlu0 %1440
          %1442 = vrot.lane.b32.xlu0 %v687, 80
          %v1443 = vpop.permute.xlu0 %1442
          %1444 = vrot.lane.b32.xlu0 %v688, 80
          %v1445 = vpop.permute.xlu0 %1444
          %1446 = vrot.lane.b32.xlu0 %v689, 80
          %v1447 = vpop.permute.xlu0 %1446
          %1448 = vrot.lane.b32.xlu0 %v690, 80
          %v1449 = vpop.permute.xlu0 %1448
          %v1451 = vsel %vm707, %v1419, 0
          %v1454 = vsel %vm707, %v1421, 0
          %v1457 = vsel %vm707, %v1423, 0
          %v1460 = vsel %vm707, %v1425, 0
          %v1463 = vsel %vm707, %v1427, 0
          %v1466 = vsel %vm707, %v1429, 0
          %v1469 = vsel %vm707, %v1431, 0
          %v1472 = vsel %vm707, %v1433, 0
          %v1475 = vsel %vm707, %v1435, 0
          %v1478 = vsel %vm707, %v1437, 0
          %v1481 = vsel %vm707, %v1439, 0
          %v1484 = vsel %vm707, %v1441, 0
          %v1487 = vsel %vm707, %v1443, 0
          %v1490 = vsel %vm707, %v1445, 0
          %v1493 = vsel %vm707, %v1447, 0
          %v1496 = vsel %vm707, %v1449, 0
          %1498 = vmatpush.bf16.xpose.msra.mxu0 %v1496
          %1499 = vmatpush.bf16.xpose.msra.mxu0 %v1493
          %1500 = vmatpush.bf16.xpose.msra.mxu0 %v1490
          %1501 = vmatpush.bf16.xpose.msra.mxu0 %v1487
          %1502 = vmatpush.bf16.xpose.msra.mxu0 %v1484
          %1503 = vmatpush.bf16.xpose.msra.mxu0 %v1481
          %1504 = vmatpush.bf16.xpose.msra.mxu0 %v1478
          %1505 = vmatpush.bf16.xpose.msra.mxu0 %v1475
          %1506 = vmatmul.bf16.gmra.mxu0 %v1451
          %v1507 = vpop.f32.mrf.mxu0
          %v1508 = vadd.f32 %v1402, %v1507
          %v1509 = vpop.f32.mrf.mxu0
          %v1510 = vadd.f32 %v1403, %v1509
          %1511 = vmatmul.bf16.gmra.mxu0 %v1454
          %v1512 = vpop.f32.mrf.mxu0
          %v1513 = vadd.f32 %v1404, %v1512
          %v1514 = vpop.f32.mrf.mxu0
          %v1515 = vadd.f32 %v1405, %v1514
          %1516 = vmatmul.bf16.gmra.mxu0 %v1457
          %v1517 = vpop.f32.mrf.mxu0
          %v1518 = vadd.f32 %v1406, %v1517
          %v1519 = vpop.f32.mrf.mxu0
          %v1520 = vadd.f32 %v1407, %v1519
          %1521 = vmatmul.bf16.gmra.mxu0 %v1460
          %v1522 = vpop.f32.mrf.mxu0
          %v1523 = vadd.f32 %v1408, %v1522
          %v1524 = vpop.f32.mrf.mxu0
          %v1525 = vadd.f32 %v1409, %v1524
          %1526 = vmatmul.bf16.gmra.mxu0 %v1463
          %v1527 = vpop.f32.mrf.mxu0
          %v1528 = vadd.f32 %v1410, %v1527
          %v1529 = vpop.f32.mrf.mxu0
          %v1530 = vadd.f32 %v1411, %v1529
          %1531 = vmatmul.bf16.gmra.mxu0 %v1466
          %v1532 = vpop.f32.mrf.mxu0
          %v1533 = vadd.f32 %v1412, %v1532
          %v1534 = vpop.f32.mrf.mxu0
          %v1535 = vadd.f32 %v1413, %v1534
          %1536 = vmatmul.bf16.gmra.mxu0 %v1469
          %v1537 = vpop.f32.mrf.mxu0
          %v1538 = vadd.f32 %v1414, %v1537
          %v1539 = vpop.f32.mrf.mxu0
          %v1540 = vadd.f32 %v1415, %v1539
          %1541 = vmatmul.bf16.gmra.mxu0 %v1472
          %v1542 = vpop.f32.mrf.mxu0
          %v1543 = vadd.f32 %v1416, %v1542
          %v1544 = vpop.f32.mrf.mxu0
          %v1545 = vadd.f32 %v1417, %v1544
          %1546 = vdwg.mxu0
          %1547 = vmax.xlane.f32.xlu0 %v1508
          %v1548 = vpop.xlane.xlu0 %1547
          %1549 = vmax.xlane.f32.xlu0 %v1510
          %v1550 = vpop.xlane.xlu0 %1549
          %1551 = vmax.xlane.f32.xlu0 %v1513
          %v1552 = vpop.xlane.xlu0 %1551
          %1553 = vmax.xlane.f32.xlu0 %v1515
          %v1554 = vpop.xlane.xlu0 %1553
          %1555 = vmax.xlane.f32.xlu0 %v1518
          %v1556 = vpop.xlane.xlu0 %1555
          %1557 = vmax.xlane.f32.xlu0 %v1520
          %v1558 = vpop.xlane.xlu0 %1557
          %1559 = vmax.xlane.f32.xlu0 %v1523
          %v1560 = vpop.xlane.xlu0 %1559
          %1561 = vmax.xlane.f32.xlu0 %v1525
          %v1562 = vpop.xlane.xlu0 %1561
          %1563 = vmax.xlane.f32.xlu0 %v1528
          %v1564 = vpop.xlane.xlu0 %1563
          %1565 = vmax.xlane.f32.xlu0 %v1530
          %v1566 = vpop.xlane.xlu0 %1565
          %1567 = vmax.xlane.f32.xlu0 %v1533
          %v1568 = vpop.xlane.xlu0 %1567
          %1569 = vmax.xlane.f32.xlu0 %v1535
          %v1570 = vpop.xlane.xlu0 %1569
          %1571 = vmax.xlane.f32.xlu0 %v1538
          %v1572 = vpop.xlane.xlu0 %1571
          %1573 = vmax.xlane.f32.xlu0 %v1540
          %v1574 = vpop.xlane.xlu0 %1573
          %1575 = vmax.xlane.f32.xlu0 %v1543
          %v1576 = vpop.xlane.xlu0 %1575
          %1577 = vmax.xlane.f32.xlu0 %v1545
          %v1578 = vpop.xlane.xlu0 %1577
          %v1579 = vsub.f32 %v1508, %v1548
          %v1580 = vsub.f32 %v1510, %v1550
          %v1581 = vsub.f32 %v1513, %v1552
          %v1582 = vsub.f32 %v1515, %v1554
          %v1583 = vsub.f32 %v1518, %v1556
          %v1584 = vsub.f32 %v1520, %v1558
          %v1585 = vsub.f32 %v1523, %v1560
          %v1586 = vsub.f32 %v1525, %v1562
          %v1587 = vsub.f32 %v1528, %v1564
          %v1588 = vsub.f32 %v1530, %v1566
          %v1589 = vsub.f32 %v1533, %v1568
          %v1590 = vsub.f32 %v1535, %v1570
          %v1591 = vsub.f32 %v1538, %v1572
          %v1592 = vsub.f32 %v1540, %v1574
          %v1593 = vsub.f32 %v1543, %v1576
          %v1594 = vsub.f32 %v1545, %v1578
          %v1595 = vmul.f32 %v1579, 1.442695
          %v1596 = vpow.pop %v1595
          %v1597 = vmul.f32 %v1580, 1.442695
          %v1598 = vpow.pop %v1597
          %v1599 = vmul.f32 %v1581, 1.442695
          %v1600 = vpow.pop %v1599
          %v1601 = vmul.f32 %v1582, 1.442695
          %v1602 = vpow.pop %v1601
          %v1603 = vmul.f32 %v1583, 1.442695
          %v1604 = vpow.pop %v1603
          %v1605 = vmul.f32 %v1584, 1.442695
          %v1606 = vpow.pop %v1605
          %v1607 = vmul.f32 %v1585, 1.442695
          %v1608 = vpow.pop %v1607
          %v1609 = vmul.f32 %v1586, 1.442695
          %v1610 = vpow.pop %v1609
          %v1611 = vmul.f32 %v1587, 1.442695
          %v1612 = vpow.pop %v1611
          %v1613 = vmul.f32 %v1588, 1.442695
          %v1614 = vpow.pop %v1613
          %v1615 = vmul.f32 %v1589, 1.442695
          %v1616 = vpow.pop %v1615
          %v1617 = vmul.f32 %v1590, 1.442695
          %v1618 = vpow.pop %v1617
          %v1619 = vmul.f32 %v1591, 1.442695
          %v1620 = vpow.pop %v1619
          %v1621 = vmul.f32 %v1592, 1.442695
          %v1622 = vpow.pop %v1621
          %v1623 = vmul.f32 %v1593, 1.442695
          %v1624 = vpow.pop %v1623
          %v1625 = vmul.f32 %v1594, 1.442695
          %v1626 = vpow.pop %v1625
          %1627 = vadd.xlane.f32.xlu0 %v1596
          %v1628 = vpop.xlane.xlu0 %1627
          %1629 = vadd.xlane.f32.xlu0 %v1598
          %v1630 = vpop.xlane.xlu0 %1629
          %1631 = vadd.xlane.f32.xlu0 %v1600
          %v1632 = vpop.xlane.xlu0 %1631
          %1633 = vadd.xlane.f32.xlu0 %v1602
          %v1634 = vpop.xlane.xlu0 %1633
          %1635 = vadd.xlane.f32.xlu0 %v1604
          %v1636 = vpop.xlane.xlu0 %1635
          %1637 = vadd.xlane.f32.xlu0 %v1606
          %v1638 = vpop.xlane.xlu0 %1637
          %1639 = vadd.xlane.f32.xlu0 %v1608
          %v1640 = vpop.xlane.xlu0 %1639
          %1641 = vadd.xlane.f32.xlu0 %v1610
          %v1642 = vpop.xlane.xlu0 %1641
          %1643 = vadd.xlane.f32.xlu0 %v1612
          %v1644 = vpop.xlane.xlu0 %1643
          %1645 = vadd.xlane.f32.xlu0 %v1614
          %v1646 = vpop.xlane.xlu0 %1645
          %1647 = vadd.xlane.f32.xlu0 %v1616
          %v1648 = vpop.xlane.xlu0 %1647
          %1649 = vadd.xlane.f32.xlu0 %v1618
          %v1650 = vpop.xlane.xlu0 %1649
          %1651 = vadd.xlane.f32.xlu0 %v1620
          %v1652 = vpop.xlane.xlu0 %1651
          %1653 = vadd.xlane.f32.xlu0 %v1622
          %v1654 = vpop.xlane.xlu0 %1653
          %1655 = vadd.xlane.f32.xlu0 %v1624
          %v1656 = vpop.xlane.xlu0 %1655
          %1657 = vadd.xlane.f32.xlu0 %v1626
          %v1658 = vpop.xlane.xlu0 %1657
          %v1659 = vrcp.pop %v1628
          %v1660 = vrcp.pop %v1630
          %v1661 = vrcp.pop %v1632
          %v1662 = vrcp.pop %v1634
          %v1663 = vrcp.pop %v1636
          %v1664 = vrcp.pop %v1638
          %v1665 = vrcp.pop %v1640
          %v1666 = vrcp.pop %v1642
          %v1667 = vrcp.pop %v1644
          %v1668 = vrcp.pop %v1646
          %v1669 = vrcp.pop %v1648
          %v1670 = vrcp.pop %v1650
          %v1671 = vrcp.pop %v1652
          %v1672 = vrcp.pop %v1654
          %v1673 = vrcp.pop %v1656
          %v1674 = vrcp.pop %v1658
          %v1675 = vmul.f32 %v1596, %v1659
          %v1676 = vmul.f32 %v1598, %v1660
          %v1677 = vmul.f32 %v1600, %v1661
          %v1678 = vmul.f32 %v1602, %v1662
          %v1679 = vmul.f32 %v1604, %v1663
          %v1680 = vmul.f32 %v1606, %v1664
          %v1681 = vmul.f32 %v1608, %v1665
          %v1682 = vmul.f32 %v1610, %v1666
          %v1683 = vmul.f32 %v1612, %v1667
          %v1684 = vmul.f32 %v1614, %v1668
          %v1685 = vmul.f32 %v1616, %v1669
          %v1686 = vmul.f32 %v1618, %v1670
          %v1687 = vmul.f32 %v1620, %v1671
          %v1688 = vmul.f32 %v1622, %v1672
          %v1689 = vmul.f32 %v1624, %v1673
          %v1690 = vmul.f32 %v1626, %v1674
          %v1691 = vpack.c.bf16 %v1676, %v1675
          %v1692 = vpack.c.bf16 %v1678, %v1677
          %v1693 = vpack.c.bf16 %v1680, %v1679
          %v1694 = vpack.c.bf16 %v1682, %v1681
          %v1695 = vpack.c.bf16 %v1684, %v1683
          %v1696 = vpack.c.bf16 %v1686, %v1685
          %v1697 = vpack.c.bf16 %v1688, %v1687
          %v1698 = vpack.c.bf16 %v1690, %v1689
          %1699 = vrot.lane.b32.xlu0 %v683, 48
          %v1700 = vpop.permute.xlu0 %1699
          %1701 = vrot.lane.b32.xlu0 %v684, 48
          %v1702 = vpop.permute.xlu0 %1701
          %1703 = vrot.lane.b32.xlu0 %v685, 48
          %v1704 = vpop.permute.xlu0 %1703
          %1705 = vrot.lane.b32.xlu0 %v686, 48
          %v1706 = vpop.permute.xlu0 %1705
          %1707 = vrot.lane.b32.xlu0 %v687, 48
          %v1708 = vpop.permute.xlu0 %1707
          %1709 = vrot.lane.b32.xlu0 %v688, 48
          %v1710 = vpop.permute.xlu0 %1709
          %1711 = vrot.lane.b32.xlu0 %v689, 48
          %v1712 = vpop.permute.xlu0 %1711
          %1713 = vrot.lane.b32.xlu0 %v690, 48
          %v1714 = vpop.permute.xlu0 %1713
          %1723 = vmatpush.bf16.msra.mxu0 %v1714
          %1724 = vmatpush.bf16.msra.mxu0 %v1712
          %1725 = vmatpush.bf16.msra.mxu0 %v1710
          %1726 = vmatpush.bf16.msra.mxu0 %v1708
          %1727 = vmatpush.bf16.msra.mxu0 %v1706
          %1728 = vmatpush.bf16.msra.mxu0 %v1704
          %1729 = vmatpush.bf16.msra.mxu0 %v1702
          %1730 = vmatpush.bf16.msra.mxu0 %v1700
          %1731 = vmatmul.bf16.gmra.mxu0 %v1691
          %v1732 = vpop.f32.mrf.mxu0
          %v1733 = vadd.f32 0.0, %v1732
          %v1734 = vpop.f32.mrf.mxu0
          %v1735 = vadd.f32 0.0, %v1734
          %1736 = vmatmul.bf16.gmra.mxu0 %v1692
          %v1737 = vpop.f32.mrf.mxu0
          %v1738 = vadd.f32 0.0, %v1737
          %v1739 = vpop.f32.mrf.mxu0
          %v1740 = vadd.f32 0.0, %v1739
          %1741 = vmatmul.bf16.gmra.mxu0 %v1693
          %v1742 = vpop.f32.mrf.mxu0
          %v1743 = vadd.f32 0.0, %v1742
          %v1744 = vpop.f32.mrf.mxu0
          %v1745 = vadd.f32 0.0, %v1744
          %1746 = vmatmul.bf16.gmra.mxu0 %v1694
          %v1747 = vpop.f32.mrf.mxu0
          %v1748 = vadd.f32 0.0, %v1747
          %v1749 = vpop.f32.mrf.mxu0
          %v1750 = vadd.f32 0.0, %v1749
          %1751 = vmatmul.bf16.gmra.mxu0 %v1695
          %v1752 = vpop.f32.mrf.mxu0
          %v1753 = vadd.f32 0.0, %v1752
          %v1754 = vpop.f32.mrf.mxu0
          %v1755 = vadd.f32 0.0, %v1754
          %1756 = vmatmul.bf16.gmra.mxu0 %v1696
          %v1757 = vpop.f32.mrf.mxu0
          %v1758 = vadd.f32 0.0, %v1757
          %v1759 = vpop.f32.mrf.mxu0
          %v1760 = vadd.f32 0.0, %v1759
          %1761 = vmatmul.bf16.gmra.mxu0 %v1697
          %v1762 = vpop.f32.mrf.mxu0
          %v1763 = vadd.f32 0.0, %v1762
          %v1764 = vpop.f32.mrf.mxu0
          %v1765 = vadd.f32 0.0, %v1764
          %1766 = vmatmul.bf16.gmra.mxu0 %v1698
          %v1767 = vpop.f32.mrf.mxu0
          %v1768 = vadd.f32 0.0, %v1767
          %v1769 = vpop.f32.mrf.mxu0
          %v1770 = vadd.f32 0.0, %v1769
          %1771 = vdwg.mxu0
          %s1772 = scalar_lea.vmem [#allocation4], 384
          %v1773 = vld [vmem:[%s1772] sm:$0xff]
          %v1774 = vld [vmem:[%s1772 + $0x8] sm:$0xff]
          %v1775 = vld [vmem:[%s1772 + $0x10] sm:$0xff]
          %v1776 = vld [vmem:[%s1772 + $0x18] sm:$0xff]
          %v1777 = vld [vmem:[%s1772 + $0x20] sm:$0xff]
          %v1778 = vld [vmem:[%s1772 + $0x28] sm:$0xff]
          %v1779 = vld [vmem:[%s1772 + $0x30] sm:$0xff]
          %v1780 = vld [vmem:[%s1772 + $0x38] sm:$0xff]
          %v1781 = vld [vmem:[%s1772 + $0x40] sm:$0xff]
          %v1782 = vld [vmem:[%s1772 + $0x48] sm:$0xff]
          %v1783 = vld [vmem:[%s1772 + $0x50] sm:$0xff]
          %v1784 = vld [vmem:[%s1772 + $0x58] sm:$0xff]
          %v1785 = vld [vmem:[%s1772 + $0x60] sm:$0xff]
          %v1786 = vld [vmem:[%s1772 + $0x68] sm:$0xff]
          %v1787 = vld [vmem:[%s1772 + $0x70] sm:$0xff]
          %v1788 = vld [vmem:[%s1772 + $0x78] sm:$0xff]
          %1789 = vrot.lane.b32.xlu0 %v683, 104
          %v1790 = vpop.permute.xlu0 %1789
          %1791 = vrot.lane.b32.xlu0 %v684, 104
          %v1792 = vpop.permute.xlu0 %1791
          %1793 = vrot.lane.b32.xlu0 %v685, 104
          %v1794 = vpop.permute.xlu0 %1793
          %1795 = vrot.lane.b32.xlu0 %v686, 104
          %v1796 = vpop.permute.xlu0 %1795
          %1797 = vrot.lane.b32.xlu0 %v687, 104
          %v1798 = vpop.permute.xlu0 %1797
          %1799 = vrot.lane.b32.xlu0 %v688, 104
          %v1800 = vpop.permute.xlu0 %1799
          %1801 = vrot.lane.b32.xlu0 %v689, 104
          %v1802 = vpop.permute.xlu0 %1801
          %1803 = vrot.lane.b32.xlu0 %v690, 104
          %v1804 = vpop.permute.xlu0 %1803
          %1805 = vrot.lane.b32.xlu0 %v683, 72
          %v1806 = vpop.permute.xlu0 %1805
          %1807 = vrot.lane.b32.xlu0 %v684, 72
          %v1808 = vpop.permute.xlu0 %1807
          %1809 = vrot.lane.b32.xlu0 %v685, 72
          %v1810 = vpop.permute.xlu0 %1809
          %1811 = vrot.lane.b32.xlu0 %v686, 72
          %v1812 = vpop.permute.xlu0 %1811
          %1813 = vrot.lane.b32.xlu0 %v687, 72
          %v1814 = vpop.permute.xlu0 %1813
          %1815 = vrot.lane.b32.xlu0 %v688, 72
          %v1816 = vpop.permute.xlu0 %1815
          %1817 = vrot.lane.b32.xlu0 %v689, 72
          %v1818 = vpop.permute.xlu0 %1817
          %1819 = vrot.lane.b32.xlu0 %v690, 72
          %v1820 = vpop.permute.xlu0 %1819
          %v1822 = vsel %vm707, %v1790, 0
          %v1825 = vsel %vm707, %v1792, 0
          %v1828 = vsel %vm707, %v1794, 0
          %v1831 = vsel %vm707, %v1796, 0
          %v1834 = vsel %vm707, %v1798, 0
          %v1837 = vsel %vm707, %v1800, 0
          %v1840 = vsel %vm707, %v1802, 0
          %v1843 = vsel %vm707, %v1804, 0
          %v1846 = vsel %vm707, %v1806, 0
          %v1849 = vsel %vm707, %v1808, 0
          %v1852 = vsel %vm707, %v1810, 0
          %v1855 = vsel %vm707, %v1812, 0
          %v1858 = vsel %vm707, %v1814, 0
          %v1861 = vsel %vm707, %v1816, 0
          %v1864 = vsel %vm707, %v1818, 0
          %v1867 = vsel %vm707, %v1820, 0
          %1869 = vmatpush.bf16.xpose.msra.mxu0 %v1867
          %1870 = vmatpush.bf16.xpose.msra.mxu0 %v1864
          %1871 = vmatpush.bf16.xpose.msra.mxu0 %v1861
          %1872 = vmatpush.bf16.xpose.msra.mxu0 %v1858
          %1873 = vmatpush.bf16.xpose.msra.mxu0 %v1855
          %1874 = vmatpush.bf16.xpose.msra.mxu0 %v1852
          %1875 = vmatpush.bf16.xpose.msra.mxu0 %v1849
          %1876 = vmatpush.bf16.xpose.msra.mxu0 %v1846
          %1877 = vmatmul.bf16.gmra.mxu0 %v1822
          %v1878 = vpop.f32.mrf.mxu0
          %v1879 = vadd.f32 %v1773, %v1878
          %v1880 = vpop.f32.mrf.mxu0
          %v1881 = vadd.f32 %v1774, %v1880
          %1882 = vmatmul.bf16.gmra.mxu0 %v1825
          %v1883 = vpop.f32.mrf.mxu0
          %v1884 = vadd.f32 %v1775, %v1883
          %v1885 = vpop.f32.mrf.mxu0
          %v1886 = vadd.f32 %v1776, %v1885
          %1887 = vmatmul.bf16.gmra.mxu0 %v1828
          %v1888 = vpop.f32.mrf.mxu0
          %v1889 = vadd.f32 %v1777, %v1888
          %v1890 = vpop.f32.mrf.mxu0
          %v1891 = vadd.f32 %v1778, %v1890
          %1892 = vmatmul.bf16.gmra.mxu0 %v1831
          %v1893 = vpop.f32.mrf.mxu0
          %v1894 = vadd.f32 %v1779, %v1893
          %v1895 = vpop.f32.mrf.mxu0
          %v1896 = vadd.f32 %v1780, %v1895
          %1897 = vmatmul.bf16.gmra.mxu0 %v1834
          %v1898 = vpop.f32.mrf.mxu0
          %v1899 = vadd.f32 %v1781, %v1898
          %v1900 = vpop.f32.mrf.mxu0
          %v1901 = vadd.f32 %v1782, %v1900
          %1902 = vmatmul.bf16.gmra.mxu0 %v1837
          %v1903 = vpop.f32.mrf.mxu0
          %v1904 = vadd.f32 %v1783, %v1903
          %v1905 = vpop.f32.mrf.mxu0
          %v1906 = vadd.f32 %v1784, %v1905
          %1907 = vmatmul.bf16.gmra.mxu0 %v1840
          %v1908 = vpop.f32.mrf.mxu0
          %v1909 = vadd.f32 %v1785, %v1908
          %v1910 = vpop.f32.mrf.mxu0
          %v1911 = vadd.f32 %v1786, %v1910
          %1912 = vmatmul.bf16.gmra.mxu0 %v1843
          %v1913 = vpop.f32.mrf.mxu0
          %v1914 = vadd.f32 %v1787, %v1913
          %v1915 = vpop.f32.mrf.mxu0
          %v1916 = vadd.f32 %v1788, %v1915
          %1917 = vdwg.mxu0
          %1918 = vmax.xlane.f32.xlu0 %v1879
          %v1919 = vpop.xlane.xlu0 %1918
          %1920 = vmax.xlane.f32.xlu0 %v1881
          %v1921 = vpop.xlane.xlu0 %1920
          %1922 = vmax.xlane.f32.xlu0 %v1884
          %v1923 = vpop.xlane.xlu0 %1922
          %1924 = vmax.xlane.f32.xlu0 %v1886
          %v1925 = vpop.xlane.xlu0 %1924
          %1926 = vmax.xlane.f32.xlu0 %v1889
          %v1927 = vpop.xlane.xlu0 %1926
          %1928 = vmax.xlane.f32.xlu0 %v1891
          %v1929 = vpop.xlane.xlu0 %1928
          %1930 = vmax.xlane.f32.xlu0 %v1894
          %v1931 = vpop.xlane.xlu0 %1930
          %1932 = vmax.xlane.f32.xlu0 %v1896
          %v1933 = vpop.xlane.xlu0 %1932
          %1934 = vmax.xlane.f32.xlu0 %v1899
          %v1935 = vpop.xlane.xlu0 %1934
          %1936 = vmax.xlane.f32.xlu0 %v1901
          %v1937 = vpop.xlane.xlu0 %1936
          %1938 = vmax.xlane.f32.xlu0 %v1904
          %v1939 = vpop.xlane.xlu0 %1938
          %1940 = vmax.xlane.f32.xlu0 %v1906
          %v1941 = vpop.xlane.xlu0 %1940
          %1942 = vmax.xlane.f32.xlu0 %v1909
          %v1943 = vpop.xlane.xlu0 %1942
          %1944 = vmax.xlane.f32.xlu0 %v1911
          %v1945 = vpop.xlane.xlu0 %1944
          %1946 = vmax.xlane.f32.xlu0 %v1914
          %v1947 = vpop.xlane.xlu0 %1946
          %1948 = vmax.xlane.f32.xlu0 %v1916
          %v1949 = vpop.xlane.xlu0 %1948
          %v1950 = vsub.f32 %v1879, %v1919
          %v1951 = vsub.f32 %v1881, %v1921
          %v1952 = vsub.f32 %v1884, %v1923
          %v1953 = vsub.f32 %v1886, %v1925
          %v1954 = vsub.f32 %v1889, %v1927
          %v1955 = vsub.f32 %v1891, %v1929
          %v1956 = vsub.f32 %v1894, %v1931
          %v1957 = vsub.f32 %v1896, %v1933
          %v1958 = vsub.f32 %v1899, %v1935
          %v1959 = vsub.f32 %v1901, %v1937
          %v1960 = vsub.f32 %v1904, %v1939
          %v1961 = vsub.f32 %v1906, %v1941
          %v1962 = vsub.f32 %v1909, %v1943
          %v1963 = vsub.f32 %v1911, %v1945
          %v1964 = vsub.f32 %v1914, %v1947
          %v1965 = vsub.f32 %v1916, %v1949
          %v1966 = vmul.f32 %v1950, 1.442695
          %v1967 = vpow.pop %v1966
          %v1968 = vmul.f32 %v1951, 1.442695
          %v1969 = vpow.pop %v1968
          %v1970 = vmul.f32 %v1952, 1.442695
          %v1971 = vpow.pop %v1970
          %v1972 = vmul.f32 %v1953, 1.442695
          %v1973 = vpow.pop %v1972
          %v1974 = vmul.f32 %v1954, 1.442695
          %v1975 = vpow.pop %v1974
          %v1976 = vmul.f32 %v1955, 1.442695
          %v1977 = vpow.pop %v1976
          %v1978 = vmul.f32 %v1956, 1.442695
          %v1979 = vpow.pop %v1978
          %v1980 = vmul.f32 %v1957, 1.442695
          %v1981 = vpow.pop %v1980
          %v1982 = vmul.f32 %v1958, 1.442695
          %v1983 = vpow.pop %v1982
          %v1984 = vmul.f32 %v1959, 1.442695
          %v1985 = vpow.pop %v1984
          %v1986 = vmul.f32 %v1960, 1.442695
          %v1987 = vpow.pop %v1986
          %v1988 = vmul.f32 %v1961, 1.442695
          %v1989 = vpow.pop %v1988
          %v1990 = vmul.f32 %v1962, 1.442695
          %v1991 = vpow.pop %v1990
          %v1992 = vmul.f32 %v1963, 1.442695
          %v1993 = vpow.pop %v1992
          %v1994 = vmul.f32 %v1964, 1.442695
          %v1995 = vpow.pop %v1994
          %v1996 = vmul.f32 %v1965, 1.442695
          %v1997 = vpow.pop %v1996
          %1998 = vadd.xlane.f32.xlu0 %v1967
          %v1999 = vpop.xlane.xlu0 %1998
          %2000 = vadd.xlane.f32.xlu0 %v1969
          %v2001 = vpop.xlane.xlu0 %2000
          %2002 = vadd.xlane.f32.xlu0 %v1971
          %v2003 = vpop.xlane.xlu0 %2002
          %2004 = vadd.xlane.f32.xlu0 %v1973
          %v2005 = vpop.xlane.xlu0 %2004
          %2006 = vadd.xlane.f32.xlu0 %v1975
          %v2007 = vpop.xlane.xlu0 %2006
          %2008 = vadd.xlane.f32.xlu0 %v1977
          %v2009 = vpop.xlane.xlu0 %2008
          %2010 = vadd.xlane.f32.xlu0 %v1979
          %v2011 = vpop.xlane.xlu0 %2010
          %2012 = vadd.xlane.f32.xlu0 %v1981
          %v2013 = vpop.xlane.xlu0 %2012
          %2014 = vadd.xlane.f32.xlu0 %v1983
          %v2015 = vpop.xlane.xlu0 %2014
          %2016 = vadd.xlane.f32.xlu0 %v1985
          %v2017 = vpop.xlane.xlu0 %2016
          %2018 = vadd.xlane.f32.xlu0 %v1987
          %v2019 = vpop.xlane.xlu0 %2018
          %2020 = vadd.xlane.f32.xlu0 %v1989
          %v2021 = vpop.xlane.xlu0 %2020
          %2022 = vadd.xlane.f32.xlu0 %v1991
          %v2023 = vpop.xlane.xlu0 %2022
          %2024 = vadd.xlane.f32.xlu0 %v1993
          %v2025 = vpop.xlane.xlu0 %2024
          %2026 = vadd.xlane.f32.xlu0 %v1995
          %v2027 = vpop.xlane.xlu0 %2026
          %2028 = vadd.xlane.f32.xlu0 %v1997
          %v2029 = vpop.xlane.xlu0 %2028
          %v2030 = vrcp.pop %v1999
          %v2031 = vrcp.pop %v2001
          %v2032 = vrcp.pop %v2003
          %v2033 = vrcp.pop %v2005
          %v2034 = vrcp.pop %v2007
          %v2035 = vrcp.pop %v2009
          %v2036 = vrcp.pop %v2011
          %v2037 = vrcp.pop %v2013
          %v2038 = vrcp.pop %v2015
          %v2039 = vrcp.pop %v2017
          %v2040 = vrcp.pop %v2019
          %v2041 = vrcp.pop %v2021
          %v2042 = vrcp.pop %v2023
          %v2043 = vrcp.pop %v2025
          %v2044 = vrcp.pop %v2027
          %v2045 = vrcp.pop %v2029
          %v2046 = vmul.f32 %v1967, %v2030
          %v2047 = vmul.f32 %v1969, %v2031
          %v2048 = vmul.f32 %v1971, %v2032
          %v2049 = vmul.f32 %v1973, %v2033
          %v2050 = vmul.f32 %v1975, %v2034
          %v2051 = vmul.f32 %v1977, %v2035
          %v2052 = vmul.f32 %v1979, %v2036
          %v2053 = vmul.f32 %v1981, %v2037
          %v2054 = vmul.f32 %v1983, %v2038
          %v2055 = vmul.f32 %v1985, %v2039
          %v2056 = vmul.f32 %v1987, %v2040
          %v2057 = vmul.f32 %v1989, %v2041
          %v2058 = vmul.f32 %v1991, %v2042
          %v2059 = vmul.f32 %v1993, %v2043
          %v2060 = vmul.f32 %v1995, %v2044
          %v2061 = vmul.f32 %v1997, %v2045
          %v2062 = vpack.c.bf16 %v2047, %v2046
          %v2063 = vpack.c.bf16 %v2049, %v2048
          %v2064 = vpack.c.bf16 %v2051, %v2050
          %v2065 = vpack.c.bf16 %v2053, %v2052
          %v2066 = vpack.c.bf16 %v2055, %v2054
          %v2067 = vpack.c.bf16 %v2057, %v2056
          %v2068 = vpack.c.bf16 %v2059, %v2058
          %v2069 = vpack.c.bf16 %v2061, %v2060
          %2070 = vrot.lane.b32.xlu0 %v683, 40
          %v2071 = vpop.permute.xlu0 %2070
          %2072 = vrot.lane.b32.xlu0 %v684, 40
          %v2073 = vpop.permute.xlu0 %2072
          %2074 = vrot.lane.b32.xlu0 %v685, 40
          %v2075 = vpop.permute.xlu0 %2074
          %2076 = vrot.lane.b32.xlu0 %v686, 40
          %v2077 = vpop.permute.xlu0 %2076
          %2078 = vrot.lane.b32.xlu0 %v687, 40
          %v2079 = vpop.permute.xlu0 %2078
          %2080 = vrot.lane.b32.xlu0 %v688, 40
          %v2081 = vpop.permute.xlu0 %2080
          %2082 = vrot.lane.b32.xlu0 %v689, 40
          %v2083 = vpop.permute.xlu0 %2082
          %2084 = vrot.lane.b32.xlu0 %v690, 40
          %v2085 = vpop.permute.xlu0 %2084
          %2094 = vmatpush.bf16.msra.mxu0 %v2085
          %2095 = vmatpush.bf16.msra.mxu0 %v2083
          %2096 = vmatpush.bf16.msra.mxu0 %v2081
          %2097 = vmatpush.bf16.msra.mxu0 %v2079
          %2098 = vmatpush.bf16.msra.mxu0 %v2077
          %2099 = vmatpush.bf16.msra.mxu0 %v2075
          %2100 = vmatpush.bf16.msra.mxu0 %v2073
          %2101 = vmatpush.bf16.msra.mxu0 %v2071
          %2102 = vmatmul.bf16.gmra.mxu0 %v2062
          %v2103 = vpop.f32.mrf.mxu0
          %v2104 = vadd.f32 0.0, %v2103
          %v2105 = vpop.f32.mrf.mxu0
          %v2106 = vadd.f32 0.0, %v2105
          %2107 = vmatmul.bf16.gmra.mxu0 %v2063
          %v2108 = vpop.f32.mrf.mxu0
          %v2109 = vadd.f32 0.0, %v2108
          %v2110 = vpop.f32.mrf.mxu0
          %v2111 = vadd.f32 0.0, %v2110
          %2112 = vmatmul.bf16.gmra.mxu0 %v2064
          %v2113 = vpop.f32.mrf.mxu0
          %v2114 = vadd.f32 0.0, %v2113
          %v2115 = vpop.f32.mrf.mxu0
          %v2116 = vadd.f32 0.0, %v2115
          %2117 = vmatmul.bf16.gmra.mxu0 %v2065
          %v2118 = vpop.f32.mrf.mxu0
          %v2119 = vadd.f32 0.0, %v2118
          %v2120 = vpop.f32.mrf.mxu0
          %v2121 = vadd.f32 0.0, %v2120
          %2122 = vmatmul.bf16.gmra.mxu0 %v2066
          %v2123 = vpop.f32.mrf.mxu0
          %v2124 = vadd.f32 0.0, %v2123
          %v2125 = vpop.f32.mrf.mxu0
          %v2126 = vadd.f32 0.0, %v2125
          %2127 = vmatmul.bf16.gmra.mxu0 %v2067
          %v2128 = vpop.f32.mrf.mxu0
          %v2129 = vadd.f32 0.0, %v2128
          %v2130 = vpop.f32.mrf.mxu0
          %v2131 = vadd.f32 0.0, %v2130
          %2132 = vmatmul.bf16.gmra.mxu0 %v2068
          %v2133 = vpop.f32.mrf.mxu0
          %v2134 = vadd.f32 0.0, %v2133
          %v2135 = vpop.f32.mrf.mxu0
          %v2136 = vadd.f32 0.0, %v2135
          %2137 = vmatmul.bf16.gmra.mxu0 %v2069
          %v2138 = vpop.f32.mrf.mxu0
          %v2139 = vadd.f32 0.0, %v2138
          %v2140 = vpop.f32.mrf.mxu0
          %v2141 = vadd.f32 0.0, %v2140
          %2142 = vdwg.mxu0
          %2159 = vrot.lane.b32.xlu0 %v1362, 8
          %v2160 = vpop.permute.xlu0 %2159
          %2161 = vrot.lane.b32.xlu0 %v1364, 8
          %v2162 = vpop.permute.xlu0 %2161
          %2163 = vrot.lane.b32.xlu0 %v1367, 8
          %v2164 = vpop.permute.xlu0 %2163
          %2165 = vrot.lane.b32.xlu0 %v1369, 8
          %v2166 = vpop.permute.xlu0 %2165
          %2167 = vrot.lane.b32.xlu0 %v1372, 8
          %v2168 = vpop.permute.xlu0 %2167
          %2169 = vrot.lane.b32.xlu0 %v1374, 8
          %v2170 = vpop.permute.xlu0 %2169
          %2171 = vrot.lane.b32.xlu0 %v1377, 8
          %v2172 = vpop.permute.xlu0 %2171
          %2173 = vrot.lane.b32.xlu0 %v1379, 8
          %v2174 = vpop.permute.xlu0 %2173
          %2175 = vrot.lane.b32.xlu0 %v1382, 8
          %v2176 = vpop.permute.xlu0 %2175
          %2177 = vrot.lane.b32.xlu0 %v1384, 8
          %v2178 = vpop.permute.xlu0 %2177
          %2179 = vrot.lane.b32.xlu0 %v1387, 8
          %v2180 = vpop.permute.xlu0 %2179
          %2181 = vrot.lane.b32.xlu0 %v1389, 8
          %v2182 = vpop.permute.xlu0 %2181
          %2183 = vrot.lane.b32.xlu0 %v1392, 8
          %v2184 = vpop.permute.xlu0 %2183
          %2185 = vrot.lane.b32.xlu0 %v1394, 8
          %v2186 = vpop.permute.xlu0 %2185
          %2187 = vrot.lane.b32.xlu0 %v1397, 8
          %v2188 = vpop.permute.xlu0 %2187
          %2189 = vrot.lane.b32.xlu0 %v1399, 8
          %v2190 = vpop.permute.xlu0 %2189
          %2223 = vrot.lane.b32.xlu0 %v1733, 16
          %v2224 = vpop.permute.xlu0 %2223
          %2225 = vrot.lane.b32.xlu0 %v1735, 16
          %v2226 = vpop.permute.xlu0 %2225
          %2227 = vrot.lane.b32.xlu0 %v1738, 16
          %v2228 = vpop.permute.xlu0 %2227
          %2229 = vrot.lane.b32.xlu0 %v1740, 16
          %v2230 = vpop.permute.xlu0 %2229
          %2231 = vrot.lane.b32.xlu0 %v1743, 16
          %v2232 = vpop.permute.xlu0 %2231
          %2233 = vrot.lane.b32.xlu0 %v1745, 16
          %v2234 = vpop.permute.xlu0 %2233
          %2235 = vrot.lane.b32.xlu0 %v1748, 16
          %v2236 = vpop.permute.xlu0 %2235
          %2237 = vrot.lane.b32.xlu0 %v1750, 16
          %v2238 = vpop.permute.xlu0 %2237
          %2239 = vrot.lane.b32.xlu0 %v1753, 16
          %v2240 = vpop.permute.xlu0 %2239
          %2241 = vrot.lane.b32.xlu0 %v1755, 16
          %v2242 = vpop.permute.xlu0 %2241
          %2243 = vrot.lane.b32.xlu0 %v1758, 16
          %v2244 = vpop.permute.xlu0 %2243
          %2245 = vrot.lane.b32.xlu0 %v1760, 16
          %v2246 = vpop.permute.xlu0 %2245
          %2247 = vrot.lane.b32.xlu0 %v1763, 16
          %v2248 = vpop.permute.xlu0 %2247
          %2249 = vrot.lane.b32.xlu0 %v1765, 16
          %v2250 = vpop.permute.xlu0 %2249
          %2251 = vrot.lane.b32.xlu0 %v1768, 16
          %v2252 = vpop.permute.xlu0 %2251
          %2253 = vrot.lane.b32.xlu0 %v1770, 16
          %v2254 = vpop.permute.xlu0 %2253
          %2287 = vrot.lane.b32.xlu0 %v2104, 24
          %v2288 = vpop.permute.xlu0 %2287
          %2289 = vrot.lane.b32.xlu0 %v2106, 24
          %v2290 = vpop.permute.xlu0 %2289
          %2291 = vrot.lane.b32.xlu0 %v2109, 24
          %v2292 = vpop.permute.xlu0 %2291
          %2293 = vrot.lane.b32.xlu0 %v2111, 24
          %v2294 = vpop.permute.xlu0 %2293
          %2295 = vrot.lane.b32.xlu0 %v2114, 24
          %v2296 = vpop.permute.xlu0 %2295
          %2297 = vrot.lane.b32.xlu0 %v2116, 24
          %v2298 = vpop.permute.xlu0 %2297
          %2299 = vrot.lane.b32.xlu0 %v2119, 24
          %v2300 = vpop.permute.xlu0 %2299
          %2301 = vrot.lane.b32.xlu0 %v2121, 24
          %v2302 = vpop.permute.xlu0 %2301
          %2303 = vrot.lane.b32.xlu0 %v2124, 24
          %v2304 = vpop.permute.xlu0 %2303
          %2305 = vrot.lane.b32.xlu0 %v2126, 24
          %v2306 = vpop.permute.xlu0 %2305
          %2307 = vrot.lane.b32.xlu0 %v2129, 24
          %v2308 = vpop.permute.xlu0 %2307
          %2309 = vrot.lane.b32.xlu0 %v2131, 24
          %v2310 = vpop.permute.xlu0 %2309
          %2311 = vrot.lane.b32.xlu0 %v2134, 24
          %v2312 = vpop.permute.xlu0 %2311
          %2313 = vrot.lane.b32.xlu0 %v2136, 24
          %v2314 = vpop.permute.xlu0 %2313
          %2315 = vrot.lane.b32.xlu0 %v2139, 24
          %v2316 = vpop.permute.xlu0 %2315
          %2317 = vrot.lane.b32.xlu0 %v2141, 24
          %v2318 = vpop.permute.xlu0 %2317
          %v2335 = vsel %vm707, %v991, %v2160
          %v2336 = vsel %vm707, %v993, %v2162
          %v2337 = vsel %vm707, %v996, %v2164
          %v2338 = vsel %vm707, %v998, %v2166
          %v2339 = vsel %vm707, %v1001, %v2168
          %v2340 = vsel %vm707, %v1003, %v2170
          %v2341 = vsel %vm707, %v1006, %v2172
          %v2342 = vsel %vm707, %v1008, %v2174
          %v2343 = vsel %vm707, %v1011, %v2176
          %v2344 = vsel %vm707, %v1013, %v2178
          %v2345 = vsel %vm707, %v1016, %v2180
          %v2346 = vsel %vm707, %v1018, %v2182
          %v2347 = vsel %vm707, %v1021, %v2184
          %v2348 = vsel %vm707, %v1023, %v2186
          %v2349 = vsel %vm707, %v1026, %v2188
          %v2350 = vsel %vm707, %v1028, %v2190
          %vm2351 = vcmask 130048
          %v2352 = vsel %vm2351, %v2335, %v2224
          %v2353 = vsel %vm2351, %v2336, %v2226
          %v2354 = vsel %vm2351, %v2337, %v2228
          %v2355 = vsel %vm2351, %v2338, %v2230
          %v2356 = vsel %vm2351, %v2339, %v2232
          %v2357 = vsel %vm2351, %v2340, %v2234
          %v2358 = vsel %vm2351, %v2341, %v2236
          %v2359 = vsel %vm2351, %v2342, %v2238
          %v2360 = vsel %vm2351, %v2343, %v2240
          %v2361 = vsel %vm2351, %v2344, %v2242
          %v2362 = vsel %vm2351, %v2345, %v2244
          %v2363 = vsel %vm2351, %v2346, %v2246
          %v2364 = vsel %vm2351, %v2347, %v2248
          %v2365 = vsel %vm2351, %v2348, %v2250
          %v2366 = vsel %vm2351, %v2349, %v2252
          %v2367 = vsel %vm2351, %v2350, %v2254
          %vm2368 = vcmask 195584
          %v2369 = vsel %vm2368, %v2352, %v2288
          %v2370 = vsel %vm2368, %v2353, %v2290
          %v2371 = vsel %vm2368, %v2354, %v2292
          %v2372 = vsel %vm2368, %v2355, %v2294
          %v2373 = vsel %vm2368, %v2356, %v2296
          %v2374 = vsel %vm2368, %v2357, %v2298
          %v2375 = vsel %vm2368, %v2358, %v2300
          %v2376 = vsel %vm2368, %v2359, %v2302
          %v2377 = vsel %vm2368, %v2360, %v2304
          %v2378 = vsel %vm2368, %v2361, %v2306
          %v2379 = vsel %vm2368, %v2362, %v2308
          %v2380 = vsel %vm2368, %v2363, %v2310
          %v2381 = vsel %vm2368, %v2364, %v2312
          %v2382 = vsel %vm2368, %v2365, %v2314
          %v2383 = vsel %vm2368, %v2366, %v2316
          %v2384 = vsel %vm2368, %v2367, %v2318
          %v2385 = vpack.c.bf16 %v2369, %v2369
          %v2386 = vpack.c.bf16 %v2370, %v2370
          %v2387 = vpack.c.bf16 %v2371, %v2371
          %v2388 = vpack.c.bf16 %v2372, %v2372
          %v2389 = vpack.c.bf16 %v2373, %v2373
          %v2390 = vpack.c.bf16 %v2374, %v2374
          %v2391 = vpack.c.bf16 %v2375, %v2375
          %v2392 = vpack.c.bf16 %v2376, %v2376
          %v2393 = vpack.c.bf16 %v2377, %v2377
          %v2394 = vpack.c.bf16 %v2378, %v2378
          %v2395 = vpack.c.bf16 %v2379, %v2379
          %v2396 = vpack.c.bf16 %v2380, %v2380
          %v2397 = vpack.c.bf16 %v2381, %v2381
          %v2398 = vpack.c.bf16 %v2382, %v2382
          %v2399 = vpack.c.bf16 %v2383, %v2383
          %v2400 = vpack.c.bf16 %v2384, %v2384
          %s2401 = smul.addr %s615, 4
          %s2402 = scalar_lea.vmem [#allocation3], %s2401
          %vm2403 = vcmask 257024
          %2404 = vst.msk [vmem:[%s2402] sm:$0xf] %vm2403, %v2385
          %2405 = vst.msk [vmem:[%s2402 + $0x4] sm:$0xf] %vm2403, %v2386
          %2406 = vst.msk [vmem:[%s2402 + $0x8] sm:$0xf] %vm2403, %v2387
          %2407 = vst.msk [vmem:[%s2402 + $0xc] sm:$0xf] %vm2403, %v2388
          %2408 = vst.msk [vmem:[%s2402 + $0x10] sm:$0xf] %vm2403, %v2389
          %2409 = vst.msk [vmem:[%s2402 + $0x14] sm:$0xf] %vm2403, %v2390
          %2410 = vst.msk [vmem:[%s2402 + $0x18] sm:$0xf] %vm2403, %v2391
          %2411 = vst.msk [vmem:[%s2402 + $0x1c] sm:$0xf] %vm2403, %v2392
          %2412 = vst.msk [vmem:[%s2402 + $0x20] sm:$0xf] %vm2403, %v2393
          %2413 = vst.msk [vmem:[%s2402 + $0x24] sm:$0xf] %vm2403, %v2394
          %2414 = vst.msk [vmem:[%s2402 + $0x28] sm:$0xf] %vm2403, %v2395
          %2415 = vst.msk [vmem:[%s2402 + $0x2c] sm:$0xf] %vm2403, %v2396
          %2416 = vst.msk [vmem:[%s2402 + $0x30] sm:$0xf] %vm2403, %v2397
          %2417 = vst.msk [vmem:[%s2402 + $0x34] sm:$0xf] %vm2403, %v2398
          %2418 = vst.msk [vmem:[%s2402 + $0x38] sm:$0xf] %vm2403, %v2399
          %2419 = vst.msk [vmem:[%s2402 + $0x3c] sm:$0xf] %vm2403, %v2400
        $region53: #{tpu_custom_call.1} parent=43 // loop_footer
          %s613 = sadd.s32 1, %s609
        $region54: #{tpu_custom_call.1} parent=43 // loop_footer_branch
          %608 = sbr.rel target = $region50
        $region55: #{tpu_custom_call.1} parent=43 // loop_exit
          _
        %v2420 = vld [vmem:[#allocation3] sm:$0xf]
        %v2421 = vld [vmem:[#allocation3 + $0x4] sm:$0xf]
        %v2422 = vld [vmem:[#allocation3 + $0x8] sm:$0xf]
        %v2423 = vld [vmem:[#allocation3 + $0xc] sm:$0xf]
        %v2424 = vld [vmem:[#allocation3 + $0x10] sm:$0xf]
        %v2425 = vld [vmem:[#allocation3 + $0x14] sm:$0xf]
        %v2426 = vld [vmem:[#allocation3 + $0x18] sm:$0xf]
        %v2427 = vld [vmem:[#allocation3 + $0x1c] sm:$0xf]
        %v2428 = vld [vmem:[#allocation3 + $0x20] sm:$0xf]
        %v2429 = vld [vmem:[#allocation3 + $0x24] sm:$0xf]
        %v2430 = vld [vmem:[#allocation3 + $0x28] sm:$0xf]
        %v2431 = vld [vmem:[#allocation3 + $0x2c] sm:$0xf]
        %v2432 = vld [vmem:[#allocation3 + $0x30] sm:$0xf]
        %v2433 = vld [vmem:[#allocation3 + $0x34] sm:$0xf]
        %v2434 = vld [vmem:[#allocation3 + $0x38] sm:$0xf]
        %v2435 = vld [vmem:[#allocation3 + $0x3c] sm:$0xf]
        %v2436 = vld [vmem:[#allocation3 + $0x40] sm:$0xf]
        %v2437 = vld [vmem:[#allocation3 + $0x44] sm:$0xf]
        %v2438 = vld [vmem:[#allocation3 + $0x48] sm:$0xf]
        %v2439 = vld [vmem:[#allocation3 + $0x4c] sm:$0xf]
        %v2440 = vld [vmem:[#allocation3 + $0x50] sm:$0xf]
        %v2441 = vld [vmem:[#allocation3 + $0x54] sm:$0xf]
        %v2442 = vld [vmem:[#allocation3 + $0x58] sm:$0xf]
        %v2443 = vld [vmem:[#allocation3 + $0x5c] sm:$0xf]
        %v2444 = vld [vmem:[#allocation3 + $0x60] sm:$0xf]
        %v2445 = vld [vmem:[#allocation3 + $0x64] sm:$0xf]
        %v2446 = vld [vmem:[#allocation3 + $0x68] sm:$0xf]
        %v2447 = vld [vmem:[#allocation3 + $0x6c] sm:$0xf]
        %v2448 = vld [vmem:[#allocation3 + $0x70] sm:$0xf]
        %v2449 = vld [vmem:[#allocation3 + $0x74] sm:$0xf]
        %v2450 = vld [vmem:[#allocation3 + $0x78] sm:$0xf]
        %v2451 = vld [vmem:[#allocation3 + $0x7c] sm:$0xf]
        %v2452 = vld [vmem:[%s4] sm:$0xf]
        %v2453 = vld [vmem:[%s4 + $0x4] sm:$0xf]
        %v2454 = vld [vmem:[%s4 + $0x8] sm:$0xf]
        %v2455 = vld [vmem:[%s4 + $0xc] sm:$0xf]
        %v2456 = vld [vmem:[%s5] sm:$0x1]
        %v2458 = vperm.slane %v2456, 0
        %v2492 = vunpack.c.l.b16 %v2420
        %v2493 = vunpack.c.l.b16 %v2421
        %v2494 = vunpack.c.l.b16 %v2422
        %v2495 = vunpack.c.l.b16 %v2423
        %v2496 = vunpack.c.l.b16 %v2424
        %v2497 = vunpack.c.l.b16 %v2425
        %v2498 = vunpack.c.l.b16 %v2426
        %v2499 = vunpack.c.l.b16 %v2427
        %v2500 = vunpack.c.l.b16 %v2428
        %v2501 = vunpack.c.l.b16 %v2429
        %v2502 = vunpack.c.l.b16 %v2430
        %v2503 = vunpack.c.l.b16 %v2431
        %v2504 = vunpack.c.l.b16 %v2432
        %v2505 = vunpack.c.l.b16 %v2433
        %v2506 = vunpack.c.l.b16 %v2434
        %v2507 = vunpack.c.l.b16 %v2435
        %v2508 = vunpack.c.l.b16 %v2436
        %v2509 = vunpack.c.l.b16 %v2437
        %v2510 = vunpack.c.l.b16 %v2438
        %v2511 = vunpack.c.l.b16 %v2439
        %v2512 = vunpack.c.l.b16 %v2440
        %v2513 = vunpack.c.l.b16 %v2441
        %v2514 = vunpack.c.l.b16 %v2442
        %v2515 = vunpack.c.l.b16 %v2443
        %v2516 = vunpack.c.l.b16 %v2444
        %v2517 = vunpack.c.l.b16 %v2445
        %v2518 = vunpack.c.l.b16 %v2446
        %v2519 = vunpack.c.l.b16 %v2447
        %v2520 = vunpack.c.l.b16 %v2448
        %v2521 = vunpack.c.l.b16 %v2449
        %v2522 = vunpack.c.l.b16 %v2450
        %v2523 = vunpack.c.l.b16 %v2451
        %v2524 = vpack.c.b16 %v2493, %v2492
        %v2525 = vpack.c.b16 %v2495, %v2494
        %v2526 = vpack.c.b16 %v2497, %v2496
        %v2527 = vpack.c.b16 %v2499, %v2498
        %v2528 = vpack.c.b16 %v2501, %v2500
        %v2529 = vpack.c.b16 %v2503, %v2502
        %v2530 = vpack.c.b16 %v2505, %v2504
        %v2531 = vpack.c.b16 %v2507, %v2506
        %v2532 = vpack.c.b16 %v2509, %v2508
        %v2533 = vpack.c.b16 %v2511, %v2510
        %v2534 = vpack.c.b16 %v2513, %v2512
        %v2535 = vpack.c.b16 %v2515, %v2514
        %v2536 = vpack.c.b16 %v2517, %v2516
        %v2537 = vpack.c.b16 %v2519, %v2518
        %v2538 = vpack.c.b16 %v2521, %v2520
        %v2539 = vpack.c.b16 %v2523, %v2522
        %v2544 = vunpack.c.l.b16 %v2452
        %v2545 = vunpack.c.l.b16 %v2453
        %v2546 = vunpack.c.l.b16 %v2454
        %v2547 = vunpack.c.l.b16 %v2455
        %v2548 = vpack.c.b16 %v2545, %v2544
        %v2549 = vpack.c.b16 %v2547, %v2546
        %v2553 = vsel %vm405, %v2524, 0
        %v2556 = vsel %vm405, %v2525, 0
        %v2559 = vsel %vm405, %v2526, 0
        %v2562 = vsel %vm405, %v2527, 0
        %v2565 = vsel %vm405, %v2528, 0
        %v2568 = vsel %vm405, %v2529, 0
        %v2571 = vsel %vm405, %v2530, 0
        %v2574 = vsel %vm405, %v2531, 0
        %v2577 = vsel %vm405, %v2532, 0
        %v2580 = vsel %vm405, %v2533, 0
        %v2583 = vsel %vm405, %v2534, 0
        %v2586 = vsel %vm405, %v2535, 0
        %v2589 = vsel %vm405, %v2536, 0
        %v2592 = vsel %vm405, %v2537, 0
        %v2595 = vsel %vm405, %v2538, 0
        %v2598 = vsel %vm405, %v2539, 0
        %2600 = vmatpush.bf16.msra.mxu0 0
        %2601 = vmatpush.bf16.msra.mxu0 0
        %2602 = vmatpush.bf16.msra.mxu0 0
        %2603 = vmatpush.bf16.msra.mxu0 0
        %2604 = vmatpush.bf16.msra.mxu0 0
        %2605 = vmatpush.bf16.msra.mxu0 0
        %2606 = vmatpush.bf16.msra.mxu0 %v2549
        %2607 = vmatpush.bf16.msra.mxu0 %v2548
        %2608 = vmatmul.bf16.gmra.mxu0 %v2553
        %v2609 = vpop.f32.mrf.mxu0
        %v2610 = vadd.f32 %v2458, %v2609
        %v2611 = vpop.f32.mrf.mxu0
        %v2612 = vadd.f32 %v2458, %v2611
        %2613 = vmatmul.bf16.gmra.mxu0 %v2556
        %v2614 = vpop.f32.mrf.mxu0
        %v2615 = vadd.f32 %v2458, %v2614
        %v2616 = vpop.f32.mrf.mxu0
        %v2617 = vadd.f32 %v2458, %v2616
        %2618 = vmatmul.bf16.gmra.mxu0 %v2559
        %v2619 = vpop.f32.mrf.mxu0
        %v2620 = vadd.f32 %v2458, %v2619
        %v2621 = vpop.f32.mrf.mxu0
        %v2622 = vadd.f32 %v2458, %v2621
        %2623 = vmatmul.bf16.gmra.mxu0 %v2562
        %v2624 = vpop.f32.mrf.mxu0
        %v2625 = vadd.f32 %v2458, %v2624
        %v2626 = vpop.f32.mrf.mxu0
        %v2627 = vadd.f32 %v2458, %v2626
        %2628 = vmatmul.bf16.gmra.mxu0 %v2565
        %v2629 = vpop.f32.mrf.mxu0
        %v2630 = vadd.f32 %v2458, %v2629
        %v2631 = vpop.f32.mrf.mxu0
        %v2632 = vadd.f32 %v2458, %v2631
        %2633 = vmatmul.bf16.gmra.mxu0 %v2568
        %v2634 = vpop.f32.mrf.mxu0
        %v2635 = vadd.f32 %v2458, %v2634
        %v2636 = vpop.f32.mrf.mxu0
        %v2637 = vadd.f32 %v2458, %v2636
        %2638 = vmatmul.bf16.gmra.mxu0 %v2571
        %v2639 = vpop.f32.mrf.mxu0
        %v2640 = vadd.f32 %v2458, %v2639
        %v2641 = vpop.f32.mrf.mxu0
        %v2642 = vadd.f32 %v2458, %v2641
        %2643 = vmatmul.bf16.gmra.mxu0 %v2574
        %v2644 = vpop.f32.mrf.mxu0
        %v2645 = vadd.f32 %v2458, %v2644
        %v2646 = vpop.f32.mrf.mxu0
        %v2647 = vadd.f32 %v2458, %v2646
        %2648 = vmatmul.bf16.gmra.mxu0 %v2577
        %v2649 = vpop.f32.mrf.mxu0
        %v2650 = vadd.f32 %v2458, %v2649
        %v2651 = vpop.f32.mrf.mxu0
        %v2652 = vadd.f32 %v2458, %v2651
        %2653 = vmatmul.bf16.gmra.mxu0 %v2580
        %v2654 = vpop.f32.mrf.mxu0
        %v2655 = vadd.f32 %v2458, %v2654
        %v2656 = vpop.f32.mrf.mxu0
        %v2657 = vadd.f32 %v2458, %v2656
        %2658 = vmatmul.bf16.gmra.mxu0 %v2583
        %v2659 = vpop.f32.mrf.mxu0
        %v2660 = vadd.f32 %v2458, %v2659
        %v2661 = vpop.f32.mrf.mxu0
        %v2662 = vadd.f32 %v2458, %v2661
        %2663 = vmatmul.bf16.gmra.mxu0 %v2586
        %v2664 = vpop.f32.mrf.mxu0
        %v2665 = vadd.f32 %v2458, %v2664
        %v2666 = vpop.f32.mrf.mxu0
        %v2667 = vadd.f32 %v2458, %v2666
        %2668 = vmatmul.bf16.gmra.mxu0 %v2589
        %v2669 = vpop.f32.mrf.mxu0
        %v2670 = vadd.f32 %v2458, %v2669
        %v2671 = vpop.f32.mrf.mxu0
        %v2672 = vadd.f32 %v2458, %v2671
        %2673 = vmatmul.bf16.gmra.mxu0 %v2592
        %v2674 = vpop.f32.mrf.mxu0
        %v2675 = vadd.f32 %v2458, %v2674
        %v2676 = vpop.f32.mrf.mxu0
        %v2677 = vadd.f32 %v2458, %v2676
        %2678 = vmatmul.bf16.gmra.mxu0 %v2595
        %v2679 = vpop.f32.mrf.mxu0
        %v2680 = vadd.f32 %v2458, %v2679
        %v2681 = vpop.f32.mrf.mxu0
        %v2682 = vadd.f32 %v2458, %v2681
        %2683 = vmatmul.bf16.gmra.mxu0 %v2598
        %v2684 = vpop.f32.mrf.mxu0
        %v2685 = vadd.f32 %v2458, %v2684
        %v2686 = vpop.f32.mrf.mxu0
        %v2687 = vadd.f32 %v2458, %v2686
        %2688 = vdwg.mxu0
        %2689 = vst.msk [vmem:[%s270] sm:$0xff] %vm405, %v2610
        %2690 = vst.msk [vmem:[%s270 + $0x8] sm:$0xff] %vm405, %v2612
        %2691 = vst.msk [vmem:[%s270 + $0x10] sm:$0xff] %vm405, %v2615
        %2692 = vst.msk [vmem:[%s270 + $0x18] sm:$0xff] %vm405, %v2617
        %2693 = vst.msk [vmem:[%s270 + $0x20] sm:$0xff] %vm405, %v2620
        %2694 = vst.msk [vmem:[%s270 + $0x28] sm:$0xff] %vm405, %v2622
        %2695 = vst.msk [vmem:[%s270 + $0x30] sm:$0xff] %vm405, %v2625
        %2696 = vst.msk [vmem:[%s270 + $0x38] sm:$0xff] %vm405, %v2627
        %2697 = vst.msk [vmem:[%s270 + $0x40] sm:$0xff] %vm405, %v2630
        %2698 = vst.msk [vmem:[%s270 + $0x48] sm:$0xff] %vm405, %v2632
        %2699 = vst.msk [vmem:[%s270 + $0x50] sm:$0xff] %vm405, %v2635
        %2700 = vst.msk [vmem:[%s270 + $0x58] sm:$0xff] %vm405, %v2637
        %2701 = vst.msk [vmem:[%s270 + $0x60] sm:$0xff] %vm405, %v2640
        %2702 = vst.msk [vmem:[%s270 + $0x68] sm:$0xff] %vm405, %v2642
        %2703 = vst.msk [vmem:[%s270 + $0x70] sm:$0xff] %vm405, %v2645
        %2704 = vst.msk [vmem:[%s270 + $0x78] sm:$0xff] %vm405, %v2647
        %2705 = vst.msk [vmem:[%s270 + $0x80] sm:$0xff] %vm405, %v2650
        %2706 = vst.msk [vmem:[%s270 + $0x88] sm:$0xff] %vm405, %v2652
        %2707 = vst.msk [vmem:[%s270 + $0x90] sm:$0xff] %vm405, %v2655
        %2708 = vst.msk [vmem:[%s270 + $0x98] sm:$0xff] %vm405, %v2657
        %2709 = vst.msk [vmem:[%s270 + $0xa0] sm:$0xff] %vm405, %v2660
        %2710 = vst.msk [vmem:[%s270 + $0xa8] sm:$0xff] %vm405, %v2662
        %2711 = vst.msk [vmem:[%s270 + $0xb0] sm:$0xff] %vm405, %v2665
        %2712 = vst.msk [vmem:[%s270 + $0xb8] sm:$0xff] %vm405, %v2667
        %2713 = vst.msk [vmem:[%s270 + $0xc0] sm:$0xff] %vm405, %v2670
        %2714 = vst.msk [vmem:[%s270 + $0xc8] sm:$0xff] %vm405, %v2672
        %2715 = vst.msk [vmem:[%s270 + $0xd0] sm:$0xff] %vm405, %v2675
        %2716 = vst.msk [vmem:[%s270 + $0xd8] sm:$0xff] %vm405, %v2677
        %2717 = vst.msk [vmem:[%s270 + $0xe0] sm:$0xff] %vm405, %v2680
        %2718 = vst.msk [vmem:[%s270 + $0xe8] sm:$0xff] %vm405, %v2682
        %2719 = vst.msk [vmem:[%s270 + $0xf0] sm:$0xff] %vm405, %v2685
        %2720 = vst.msk [vmem:[%s270 + $0xf8] sm:$0xff] %vm405, %v2687
        %s2721 = smul.u32 32, %s18
        %p2722 = scmp.lt.s32.totalorder %s2721, 63
        %s2723 = scalar_select %p2722, %s2721, 63
        %s2724 = smul.addr %s2723, 8
        %s2725 = scalar_lea.vmem %s6, %s2724
        // Predicated region
        $region56: #{tpu_custom_call.1} parent=43 // pred_check
          %p2726 = pneg %p167
        $region57: #{tpu_custom_call.1} parent=43 // pred_check_branch
          %2728 = sbr.rel (%p2726) target = $region59
        $region58: #{tpu_custom_call.1} parent=43 // pred_region
          %s2729 = smul.u32 32, %s18
        $region59: #{tpu_custom_call.1} parent=43 // pred_fallthru
          _
      $region44: #{tpu_custom_call.1} parent=5 // pred_fallthru
        _
      %p2730 = scmp.le.s32.totalorder 2, %s13
      // Predicated region
      $region60: #{tpu_custom_call.1} parent=5 // pred_check
        %p2731 = pneg %p2730
      $region61: #{tpu_custom_call.1} parent=5 // pred_check_branch
        %2733 = sbr.rel (%p2731) target = $region63
      $region62: #{tpu_custom_call.1} parent=5 // pred_region
        %s2734 = ssub.s32 %s13, 2
        // Predicated region
        $region64: #{tpu_custom_call.1} parent=62 // pred_check
          %p2735 = pneg %p173
        $region65: #{tpu_custom_call.1} parent=62 // pred_check_branch
          %2737 = sbr.rel (%p2735) target = $region67
        $region66: #{tpu_custom_call.1} parent=62 // pred_region
          %s2738 = smul.u32 32, %s19
          %p2739 = scmp.lt.s32.totalorder %s2738, 63
          %s2740 = scalar_select %p2739, %s2738, 63
          %s2741 = smul.addr %s2740, 8
          %s2742 = scalar_lea.vmem %s6, %s2741
        $region67: #{tpu_custom_call.1} parent=62 // pred_fallthru
          _
      $region63: #{tpu_custom_call.1} parent=5 // pred_fallthru
        _
    $region6: #{tpu_custom_call.1} parent=1 // loop_footer
      %s17 = sadd.s32 1, %s13
    $region7: #{tpu_custom_call.1} parent=1 // loop_footer_branch
      %12 = sbr.rel target = $region3
    $region8: #{tpu_custom_call.1} parent=1 // loop_exit
      _
    %2743 = vsyncpa [#allocation5], 1
    %s2744 = scalar_lea.sflag [#allocation5], 1
    %2745 = vsyncpa %s2744, 1

</llo_original>
